<compile_context>
chip_gen: v5e
topology: v5e:2x2
jax: 0.10.0
libtpu: 0.0.40
codegen_flags: <defaults>
</compile_context>

<pallas_src>
import functools

import jax
import jax.numpy as jnp
from jax.experimental import pallas as pl
from jax.experimental.pallas import tpu as pltpu


def _largest_divisor_leq(n, cap):
    cap = int(max(1, min(n, cap)))
    for d in range(cap, 0, -1):
        if n % d == 0:
            return d
    return 1


def _shift_flat(x, s):
    """result[b, p] = x[b, p + s] if 0 <= p + s < P else 0 (s is a static int)."""
    bt, p = x.shape
    if s == 0:
        return x
    if abs(s) >= p:
        return jnp.zeros_like(x)
    if s > 0:
        return jnp.concatenate([x[:, s:], jnp.zeros((bt, s), x.dtype)], axis=1)
    return jnp.concatenate([jnp.zeros((bt, -s), x.dtype), x[:, :p + s]], axis=1)


def _conv_sigmoid_store(sum_map, max_map, w_ref, o_ref, *, H, W, K):
    """2-in/1-out KxK 'same' cross-correlation (PyTorch conv2d semantics,
    avg-branch weights already scaled by 1/C) followed by sigmoid + store."""
    pad = (K - 1) // 2
    hw = H * W

    # Column index of every flattened spatial position (lane axis).
    col = jax.lax.broadcasted_iota(jnp.int32, (1, hw), 1) % W

    # Hoisted column shifts (2*K lane shifts), then K row shifts of the
    # per-kernel-row partial sums.  Out-of-image columns are masked;
    # out-of-image rows are handled by the zero fill of the flat shift.
    row_parts = [None] * K
    for j in range(K):
        dj = j - pad
        u = _shift_flat(sum_map, dj)                     # sum (=C*avg), col-shifted
        v = _shift_flat(max_map, dj)                     # max, col-shifted
        if dj != 0:
            ok = jnp.logical_and(col + dj >= 0, col + dj < W)
            u = jnp.where(ok, u, 0.0)
            v = jnp.where(ok, v, 0.0)
        for i in range(K):
            term = w_ref[i * K + j] * u + w_ref[K * K + i * K + j] * v
            row_parts[i] = term if row_parts[i] is None else row_parts[i] + term

    acc = None
    for i in range(K):
        shifted = _shift_flat(row_parts[i], (i - pad) * W)   # row shift
        acc = shifted if acc is None else acc + shifted

    o_ref[:, 0, :] = jax.nn.sigmoid(acc).astype(o_ref.dtype)


def spatial_attention_kernel(x_ref, w_ref, o_ref, sum_sc, max_sc,
                             *, H, W, K, n_k_steps):
    # x_ref : (Bt, Ct, H*W) VMEM input block (flat spatial, lane dense)
    # w_ref : (2*K*K,)      SMEM flat conv weight, index = ci*K*K + i*K + j
    # o_ref : (Bt, 1, H*W)  VMEM output block (lane dense)
    # sum_sc, max_sc : (Bt, H*W) f32 VMEM running channel sum / max
    x = x_ref[...].astype(jnp.float32)              # (Bt, Ct, HW)
    part_sum = jnp.sum(x, axis=1)                   # (Bt, HW)
    part_max = jnp.max(x, axis=1)                   # (Bt, HW)

    if n_k_steps == 1:
        # Single channel tile: skip the accumulator round-trip entirely.
        _conv_sigmoid_store(part_sum, part_max, w_ref, o_ref, H=H, W=W, K=K)
        return

    k_step = pl.program_id(1)

    @pl.when(k_step == 0)
    def _():
        sum_sc[...] = part_sum
        max_sc[...] = part_max

    @pl.when(k_step > 0)
    def _():
        sum_sc[...] = sum_sc[...] + part_sum
        max_sc[...] = jnp.maximum(max_sc[...], part_max)

    @pl.when(k_step == n_k_steps - 1)
    def _():
        _conv_sigmoid_store(sum_sc[...], max_sc[...], w_ref, o_ref, H=H, W=W, K=K)


def spatial_attention(x, weight, kernel_size=7):
    """x: (B, C, H, W), weight: (1, 2, K, K).  Returns (B, 1, H, W)."""
    b, c, h, w = x.shape
    k = kernel_size
    assert weight.shape == (1, 2, k, k)
    hw = h * w

    x_flat = x.reshape(b, c, hw)                          # lane-dense spatial

    # Fold the 1/C mean normalization into the avg-branch conv weights
    # (98-element wrapper op) so the kernel only builds a channel-sum map.
    w_f32 = weight.astype(jnp.float32)
    w_scaled = w_f32.at[:, 0].multiply(jnp.float32(1.0 / c))
    w_flat = w_scaled.reshape(2 * k * k)

    itemsize = x.dtype.itemsize
    block_budget = 2 * 1024 * 1024                        # per input block (double buffered)

    # Batch tile: up to 8 images per grid step, bounded by the VMEM budget.
    bt_cap = max(1, block_budget // max(1, c * hw * itemsize))
    bt = _largest_divisor_leq(b, min(8, bt_cap))

    # Channel tile: full C if it fits, else the largest multiple-of-8 divisor
    # that fits (keeps the (8,128) block constraint satisfied).
    ct = c
    if bt * c * hw * itemsize > block_budget:
        cand = 8 * (c // 8)
        while cand >= 8:
            if c % cand == 0 and bt * cand * hw * itemsize <= block_budget:
                ct = cand
                break
            cand -= 8

    grid = (b // bt, c // ct)

    kernel = functools.partial(spatial_attention_kernel,
                               H=h, W=w, K=k, n_k_steps=grid[1])
    out_flat = pl.pallas_call(
        kernel,
        out_shape=jax.ShapeDtypeStruct((b, 1, hw), x.dtype),
        grid=grid,
        in_specs=[
            pl.BlockSpec((bt, ct, hw), lambda bi, ki: (bi, ki, 0)),
            pl.BlockSpec(memory_space=pltpu.MemorySpace.SMEM),
        ],
        out_specs=pl.BlockSpec((bt, 1, hw), lambda bi, ki: (bi, 0, 0)),
        scratch_shapes=[
            pltpu.VMEM((bt, hw), jnp.float32),   # running channel sum
            pltpu.VMEM((bt, hw), jnp.float32),   # running channel max
        ],
        compiler_params=pltpu.CompilerParams(
            dimension_semantics=("parallel", "arbitrary"),
            vmem_limit_bytes=32 * 1024 * 1024),
    )(x_flat, w_flat)
    return out_flat.reshape(b, 1, h, w)


def _reference(x, weight, kernel_size=7):
    pad = (kernel_size - 1) // 2
    feats = jnp.concatenate(
        [jnp.mean(x, axis=1, keepdims=True), jnp.max(x, axis=1, keepdims=True)],
        axis=1)
    out = jax.lax.conv_general_dilated(
        feats, weight, window_strides=(1, 1),
        padding=[(pad, pad), (pad, pad)],
        dimension_numbers=("NCHW", "OIHW", "NCHW"))
    return jax.nn.sigmoid(out)


if __name__ == "__main__":
    key = jax.random.PRNGKey(0)
    kx, kw = jax.random.split(key)

    B, C, H, W = 2, 4, 16, 16
    kernel_size = 7

    x = jax.random.normal(kx, (B, C, H, W), dtype=jnp.float32)

    # Deterministic Conv2d(2, 1, 7, bias=False) init (PyTorch-style uniform).
    fan_in = 2 * kernel_size * kernel_size
    bound = 1.0 / float(fan_in) ** 0.5
    weight = jax.random.uniform(
        kw, (1, 2, kernel_size, kernel_size),
        minval=-bound, maxval=bound, dtype=jnp.float32)

    out = spatial_attention(x, weight, kernel_size)
    out = jax.block_until_ready(out)

    ref = _reference(x, weight, kernel_size)
    assert out.shape == (B, 1, H, W)
    assert jnp.allclose(out, ref, atol=1e-5, rtol=1e-5), "mismatch vs reference"

    print("KERNEL_OK")
</pallas_src>

<mosaic_0001>
module attributes {stable_mosaic.version = 11 : i64} {
  func.func @spatial_attention_kernel(%arg0: i32, %arg1: i32, %arg2: memref<2x4x256xf32, #tpu.memory_space<vmem>>, %arg3: memref<98xf32, #tpu.memory_space<smem>>, %arg4: memref<2x1x256xf32, #tpu.memory_space<vmem>>, %arg5: memref<2x256xf32, #tpu.memory_space<vmem>>, %arg6: memref<2x256xf32, #tpu.memory_space<vmem>>) attributes {dimension_semantics = [#tpu.dimension_semantics<parallel>, #tpu.dimension_semantics<arbitrary>], iteration_bounds = array<i64: 1, 1>, scalar_prefetch = 0 : i64, scratch_operands = 2 : i64, tpu.core_type = #tpu.core_type<tc>, window_params = [{transform_indices = @transform_0, window_bounds = array<i64: 2, 4, 256>}, {transform_indices = @transform_1, window_bounds = array<i64: 98>}, {transform_indices = @transform_2, window_bounds = array<i64: 2, 1, 256>}]} {
    %c0 = arith.constant 0 : index
    %c0_0 = arith.constant 0 : index
    %c0_1 = arith.constant 0 : index
    %0 = vector.load %arg2[%c0, %c0_0, %c0_1] : memref<2x4x256xf32, #tpu.memory_space<vmem>>, vector<2x4x256xf32>
    %cst = arith.constant dense<0.000000e+00> : vector<2x256xf32>
    %1 = vector.multi_reduction <add>, %0, %cst [1] : vector<2x4x256xf32> to vector<2x256xf32>
    %cst_2 = arith.constant dense<0xFF800000> : vector<2x256xf32>
    %2 = vector.multi_reduction <maximumf>, %0, %cst_2 [1] : vector<2x4x256xf32> to vector<2x256xf32>
    %3 = tpu.iota {dimensions = array<i32: 1>} : vector<1x256xi32>
    %c16_i32 = arith.constant 16 : i32
    %c0_i32 = arith.constant 0 : i32
    %4 = arith.cmpi eq, %c16_i32, %c0_i32 : i32
    %c1_i32 = arith.constant 1 : i32
    %5 = arith.select %4, %c1_i32, %c16_i32 : i32
    %6 = vector.broadcast %5 : i32 to vector<1x256xi32>
    %7 = arith.remsi %3, %6 : vector<1x256xi32>
    %c0_i32_3 = arith.constant 0 : i32
    %8 = vector.broadcast %c0_i32_3 : i32 to vector<1x256xi32>
    %9 = arith.cmpi ne, %7, %8 : vector<1x256xi32>
    %c0_i32_4 = arith.constant 0 : i32
    %10 = vector.broadcast %c0_i32_4 : i32 to vector<1x256xi32>
    %11 = arith.cmpi slt, %7, %10 : vector<1x256xi32>
    %c0_i32_5 = arith.constant 0 : i32
    %12 = arith.cmpi slt, %5, %c0_i32_5 : i32
    %13 = vector.broadcast %12 : i1 to vector<1x256xi1>
    %14 = vector.broadcast %13 : vector<1x256xi1> to vector<1x256xi1>
    %15 = arith.xori %11, %14 : vector<1x256xi1>
    %16 = arith.andi %15, %9 : vector<1x256xi1>
    %17 = vector.broadcast %5 : i32 to vector<1x256xi32>
    %18 = arith.addi %7, %17 : vector<1x256xi32>
    %19 = arith.select %16, %18, %7 : vector<1x256xi1>, vector<1x256xi32>
    %cst_6 = arith.constant 0.000000e+00 : f32
    %20 = vector.broadcast %cst_6 : f32 to vector<2x3xf32>
    %21 = vector.extract_strided_slice %1 {offsets = [0, 0], sizes = [2, 253], strides = [1, 1]} : vector<2x256xf32> to vector<2x253xf32>
    %22 = tpu.concatenate %20, %21 in 1 : vector<2x3xf32>, vector<2x253xf32> -> vector<2x256xf32>
    %cst_7 = arith.constant 0.000000e+00 : f32
    %23 = vector.broadcast %cst_7 : f32 to vector<2x3xf32>
    %24 = vector.extract_strided_slice %2 {offsets = [0, 0], sizes = [2, 253], strides = [1, 1]} : vector<2x256xf32> to vector<2x253xf32>
    %25 = tpu.concatenate %23, %24 in 1 : vector<2x3xf32>, vector<2x253xf32> -> vector<2x256xf32>
    %c-3_i32 = arith.constant -3 : i32
    %26 = vector.broadcast %c-3_i32 : i32 to vector<1x256xi32>
    %27 = arith.addi %19, %26 : vector<1x256xi32>
    %c0_i32_8 = arith.constant 0 : i32
    %28 = vector.broadcast %c0_i32_8 : i32 to vector<1x256xi32>
    %29 = arith.cmpi sge, %27, %28 : vector<1x256xi32>
    %c-3_i32_9 = arith.constant -3 : i32
    %30 = vector.broadcast %c-3_i32_9 : i32 to vector<1x256xi32>
    %31 = arith.addi %19, %30 : vector<1x256xi32>
    %c16_i32_10 = arith.constant 16 : i32
    %32 = vector.broadcast %c16_i32_10 : i32 to vector<1x256xi32>
    %33 = arith.cmpi slt, %31, %32 : vector<1x256xi32>
    %34 = arith.andi %29, %33 : vector<1x256xi1>
    %cst_11 = arith.constant 0.000000e+00 : f32
    %35 = vector.shape_cast %34 : vector<1x256xi1> to vector<1x256xi1>
    %36 = vector.broadcast %35 : vector<1x256xi1> to vector<2x256xi1>
    %37 = vector.broadcast %cst_11 : f32 to vector<2x256xf32>
    %38 = arith.select %36, %22, %37 : vector<2x256xi1>, vector<2x256xf32>
    %cst_12 = arith.constant 0.000000e+00 : f32
    %39 = vector.shape_cast %34 : vector<1x256xi1> to vector<1x256xi1>
    %40 = vector.broadcast %39 : vector<1x256xi1> to vector<2x256xi1>
    %41 = vector.broadcast %cst_12 : f32 to vector<2x256xf32>
    %42 = arith.select %40, %25, %41 : vector<2x256xi1>, vector<2x256xf32>
    %c0_13 = arith.constant 0 : index
    %43 = memref.load %arg3[%c0_13] : memref<98xf32, #tpu.memory_space<smem>>
    %44 = vector.broadcast %43 : f32 to vector<2x256xf32>
    %45 = arith.mulf %44, %38 : vector<2x256xf32>
    %c49 = arith.constant 49 : index
    %46 = memref.load %arg3[%c49] : memref<98xf32, #tpu.memory_space<smem>>
    %47 = vector.broadcast %46 : f32 to vector<2x256xf32>
    %48 = arith.mulf %47, %42 : vector<2x256xf32>
    %49 = arith.addf %45, %48 : vector<2x256xf32>
    %c7 = arith.constant 7 : index
    %50 = memref.load %arg3[%c7] : memref<98xf32, #tpu.memory_space<smem>>
    %51 = vector.broadcast %50 : f32 to vector<2x256xf32>
    %52 = arith.mulf %51, %38 : vector<2x256xf32>
    %c56 = arith.constant 56 : index
    %53 = memref.load %arg3[%c56] : memref<98xf32, #tpu.memory_space<smem>>
    %54 = vector.broadcast %53 : f32 to vector<2x256xf32>
    %55 = arith.mulf %54, %42 : vector<2x256xf32>
    %56 = arith.addf %52, %55 : vector<2x256xf32>
    %c14 = arith.constant 14 : index
    %57 = memref.load %arg3[%c14] : memref<98xf32, #tpu.memory_space<smem>>
    %58 = vector.broadcast %57 : f32 to vector<2x256xf32>
    %59 = arith.mulf %58, %38 : vector<2x256xf32>
    %c63 = arith.constant 63 : index
    %60 = memref.load %arg3[%c63] : memref<98xf32, #tpu.memory_space<smem>>
    %61 = vector.broadcast %60 : f32 to vector<2x256xf32>
    %62 = arith.mulf %61, %42 : vector<2x256xf32>
    %63 = arith.addf %59, %62 : vector<2x256xf32>
    %c21 = arith.constant 21 : index
    %64 = memref.load %arg3[%c21] : memref<98xf32, #tpu.memory_space<smem>>
    %65 = vector.broadcast %64 : f32 to vector<2x256xf32>
    %66 = arith.mulf %65, %38 : vector<2x256xf32>
    %c70 = arith.constant 70 : index
    %67 = memref.load %arg3[%c70] : memref<98xf32, #tpu.memory_space<smem>>
    %68 = vector.broadcast %67 : f32 to vector<2x256xf32>
    %69 = arith.mulf %68, %42 : vector<2x256xf32>
    %70 = arith.addf %66, %69 : vector<2x256xf32>
    %c28 = arith.constant 28 : index
    %71 = memref.load %arg3[%c28] : memref<98xf32, #tpu.memory_space<smem>>
    %72 = vector.broadcast %71 : f32 to vector<2x256xf32>
    %73 = arith.mulf %72, %38 : vector<2x256xf32>
    %c77 = arith.constant 77 : index
    %74 = memref.load %arg3[%c77] : memref<98xf32, #tpu.memory_space<smem>>
    %75 = vector.broadcast %74 : f32 to vector<2x256xf32>
    %76 = arith.mulf %75, %42 : vector<2x256xf32>
    %77 = arith.addf %73, %76 : vector<2x256xf32>
    %c35 = arith.constant 35 : index
    %78 = memref.load %arg3[%c35] : memref<98xf32, #tpu.memory_space<smem>>
    %79 = vector.broadcast %78 : f32 to vector<2x256xf32>
    %80 = arith.mulf %79, %38 : vector<2x256xf32>
    %c84 = arith.constant 84 : index
    %81 = memref.load %arg3[%c84] : memref<98xf32, #tpu.memory_space<smem>>
    %82 = vector.broadcast %81 : f32 to vector<2x256xf32>
    %83 = arith.mulf %82, %42 : vector<2x256xf32>
    %84 = arith.addf %80, %83 : vector<2x256xf32>
    %c42 = arith.constant 42 : index
    %85 = memref.load %arg3[%c42] : memref<98xf32, #tpu.memory_space<smem>>
    %86 = vector.broadcast %85 : f32 to vector<2x256xf32>
    %87 = arith.mulf %86, %38 : vector<2x256xf32>
    %c91 = arith.constant 91 : index
    %88 = memref.load %arg3[%c91] : memref<98xf32, #tpu.memory_space<smem>>
    %89 = vector.broadcast %88 : f32 to vector<2x256xf32>
    %90 = arith.mulf %89, %42 : vector<2x256xf32>
    %91 = arith.addf %87, %90 : vector<2x256xf32>
    %cst_14 = arith.constant 0.000000e+00 : f32
    %92 = vector.broadcast %cst_14 : f32 to vector<2x2xf32>
    %93 = vector.extract_strided_slice %1 {offsets = [0, 0], sizes = [2, 254], strides = [1, 1]} : vector<2x256xf32> to vector<2x254xf32>
    %94 = tpu.concatenate %92, %93 in 1 : vector<2x2xf32>, vector<2x254xf32> -> vector<2x256xf32>
    %cst_15 = arith.constant 0.000000e+00 : f32
    %95 = vector.broadcast %cst_15 : f32 to vector<2x2xf32>
    %96 = vector.extract_strided_slice %2 {offsets = [0, 0], sizes = [2, 254], strides = [1, 1]} : vector<2x256xf32> to vector<2x254xf32>
    %97 = tpu.concatenate %95, %96 in 1 : vector<2x2xf32>, vector<2x254xf32> -> vector<2x256xf32>
    %c-2_i32 = arith.constant -2 : i32
    %98 = vector.broadcast %c-2_i32 : i32 to vector<1x256xi32>
    %99 = arith.addi %19, %98 : vector<1x256xi32>
    %c0_i32_16 = arith.constant 0 : i32
    %100 = vector.broadcast %c0_i32_16 : i32 to vector<1x256xi32>
    %101 = arith.cmpi sge, %99, %100 : vector<1x256xi32>
    %c-2_i32_17 = arith.constant -2 : i32
    %102 = vector.broadcast %c-2_i32_17 : i32 to vector<1x256xi32>
    %103 = arith.addi %19, %102 : vector<1x256xi32>
    %c16_i32_18 = arith.constant 16 : i32
    %104 = vector.broadcast %c16_i32_18 : i32 to vector<1x256xi32>
    %105 = arith.cmpi slt, %103, %104 : vector<1x256xi32>
    %106 = arith.andi %101, %105 : vector<1x256xi1>
    %cst_19 = arith.constant 0.000000e+00 : f32
    %107 = vector.shape_cast %106 : vector<1x256xi1> to vector<1x256xi1>
    %108 = vector.broadcast %107 : vector<1x256xi1> to vector<2x256xi1>
    %109 = vector.broadcast %cst_19 : f32 to vector<2x256xf32>
    %110 = arith.select %108, %94, %109 : vector<2x256xi1>, vector<2x256xf32>
    %cst_20 = arith.constant 0.000000e+00 : f32
    %111 = vector.shape_cast %106 : vector<1x256xi1> to vector<1x256xi1>
    %112 = vector.broadcast %111 : vector<1x256xi1> to vector<2x256xi1>
    %113 = vector.broadcast %cst_20 : f32 to vector<2x256xf32>
    %114 = arith.select %112, %97, %113 : vector<2x256xi1>, vector<2x256xf32>
    %c1 = arith.constant 1 : index
    %115 = memref.load %arg3[%c1] : memref<98xf32, #tpu.memory_space<smem>>
    %116 = vector.broadcast %115 : f32 to vector<2x256xf32>
    %117 = arith.mulf %116, %110 : vector<2x256xf32>
    %c50 = arith.constant 50 : index
    %118 = memref.load %arg3[%c50] : memref<98xf32, #tpu.memory_space<smem>>
    %119 = vector.broadcast %118 : f32 to vector<2x256xf32>
    %120 = arith.mulf %119, %114 : vector<2x256xf32>
    %121 = arith.addf %117, %120 : vector<2x256xf32>
    %122 = arith.addf %49, %121 : vector<2x256xf32>
    %c8 = arith.constant 8 : index
    %123 = memref.load %arg3[%c8] : memref<98xf32, #tpu.memory_space<smem>>
    %124 = vector.broadcast %123 : f32 to vector<2x256xf32>
    %125 = arith.mulf %124, %110 : vector<2x256xf32>
    %c57 = arith.constant 57 : index
    %126 = memref.load %arg3[%c57] : memref<98xf32, #tpu.memory_space<smem>>
    %127 = vector.broadcast %126 : f32 to vector<2x256xf32>
    %128 = arith.mulf %127, %114 : vector<2x256xf32>
    %129 = arith.addf %125, %128 : vector<2x256xf32>
    %130 = arith.addf %56, %129 : vector<2x256xf32>
    %c15 = arith.constant 15 : index
    %131 = memref.load %arg3[%c15] : memref<98xf32, #tpu.memory_space<smem>>
    %132 = vector.broadcast %131 : f32 to vector<2x256xf32>
    %133 = arith.mulf %132, %110 : vector<2x256xf32>
    %c64 = arith.constant 64 : index
    %134 = memref.load %arg3[%c64] : memref<98xf32, #tpu.memory_space<smem>>
    %135 = vector.broadcast %134 : f32 to vector<2x256xf32>
    %136 = arith.mulf %135, %114 : vector<2x256xf32>
    %137 = arith.addf %133, %136 : vector<2x256xf32>
    %138 = arith.addf %63, %137 : vector<2x256xf32>
    %c22 = arith.constant 22 : index
    %139 = memref.load %arg3[%c22] : memref<98xf32, #tpu.memory_space<smem>>
    %140 = vector.broadcast %139 : f32 to vector<2x256xf32>
    %141 = arith.mulf %140, %110 : vector<2x256xf32>
    %c71 = arith.constant 71 : index
    %142 = memref.load %arg3[%c71] : memref<98xf32, #tpu.memory_space<smem>>
    %143 = vector.broadcast %142 : f32 to vector<2x256xf32>
    %144 = arith.mulf %143, %114 : vector<2x256xf32>
    %145 = arith.addf %141, %144 : vector<2x256xf32>
    %146 = arith.addf %70, %145 : vector<2x256xf32>
    %c29 = arith.constant 29 : index
    %147 = memref.load %arg3[%c29] : memref<98xf32, #tpu.memory_space<smem>>
    %148 = vector.broadcast %147 : f32 to vector<2x256xf32>
    %149 = arith.mulf %148, %110 : vector<2x256xf32>
    %c78 = arith.constant 78 : index
    %150 = memref.load %arg3[%c78] : memref<98xf32, #tpu.memory_space<smem>>
    %151 = vector.broadcast %150 : f32 to vector<2x256xf32>
    %152 = arith.mulf %151, %114 : vector<2x256xf32>
    %153 = arith.addf %149, %152 : vector<2x256xf32>
    %154 = arith.addf %77, %153 : vector<2x256xf32>
    %c36 = arith.constant 36 : index
    %155 = memref.load %arg3[%c36] : memref<98xf32, #tpu.memory_space<smem>>
    %156 = vector.broadcast %155 : f32 to vector<2x256xf32>
    %157 = arith.mulf %156, %110 : vector<2x256xf32>
    %c85 = arith.constant 85 : index
    %158 = memref.load %arg3[%c85] : memref<98xf32, #tpu.memory_space<smem>>
    %159 = vector.broadcast %158 : f32 to vector<2x256xf32>
    %160 = arith.mulf %159, %114 : vector<2x256xf32>
    %161 = arith.addf %157, %160 : vector<2x256xf32>
    %162 = arith.addf %84, %161 : vector<2x256xf32>
    %c43 = arith.constant 43 : index
    %163 = memref.load %arg3[%c43] : memref<98xf32, #tpu.memory_space<smem>>
    %164 = vector.broadcast %163 : f32 to vector<2x256xf32>
    %165 = arith.mulf %164, %110 : vector<2x256xf32>
    %c92 = arith.constant 92 : index
    %166 = memref.load %arg3[%c92] : memref<98xf32, #tpu.memory_space<smem>>
    %167 = vector.broadcast %166 : f32 to vector<2x256xf32>
    %168 = arith.mulf %167, %114 : vector<2x256xf32>
    %169 = arith.addf %165, %168 : vector<2x256xf32>
    %170 = arith.addf %91, %169 : vector<2x256xf32>
    %cst_21 = arith.constant 0.000000e+00 : f32
    %171 = vector.broadcast %cst_21 : f32 to vector<2x1xf32>
    %172 = vector.extract_strided_slice %1 {offsets = [0, 0], sizes = [2, 255], strides = [1, 1]} : vector<2x256xf32> to vector<2x255xf32>
    %173 = tpu.concatenate %171, %172 in 1 : vector<2x1xf32>, vector<2x255xf32> -> vector<2x256xf32>
    %cst_22 = arith.constant 0.000000e+00 : f32
    %174 = vector.broadcast %cst_22 : f32 to vector<2x1xf32>
    %175 = vector.extract_strided_slice %2 {offsets = [0, 0], sizes = [2, 255], strides = [1, 1]} : vector<2x256xf32> to vector<2x255xf32>
    %176 = tpu.concatenate %174, %175 in 1 : vector<2x1xf32>, vector<2x255xf32> -> vector<2x256xf32>
    %c-1_i32 = arith.constant -1 : i32
    %177 = vector.broadcast %c-1_i32 : i32 to vector<1x256xi32>
    %178 = arith.addi %19, %177 : vector<1x256xi32>
    %c0_i32_23 = arith.constant 0 : i32
    %179 = vector.broadcast %c0_i32_23 : i32 to vector<1x256xi32>
    %180 = arith.cmpi sge, %178, %179 : vector<1x256xi32>
    %c-1_i32_24 = arith.constant -1 : i32
    %181 = vector.broadcast %c-1_i32_24 : i32 to vector<1x256xi32>
    %182 = arith.addi %19, %181 : vector<1x256xi32>
    %c16_i32_25 = arith.constant 16 : i32
    %183 = vector.broadcast %c16_i32_25 : i32 to vector<1x256xi32>
    %184 = arith.cmpi slt, %182, %183 : vector<1x256xi32>
    %185 = arith.andi %180, %184 : vector<1x256xi1>
    %cst_26 = arith.constant 0.000000e+00 : f32
    %186 = vector.shape_cast %185 : vector<1x256xi1> to vector<1x256xi1>
    %187 = vector.broadcast %186 : vector<1x256xi1> to vector<2x256xi1>
    %188 = vector.broadcast %cst_26 : f32 to vector<2x256xf32>
    %189 = arith.select %187, %173, %188 : vector<2x256xi1>, vector<2x256xf32>
    %cst_27 = arith.constant 0.000000e+00 : f32
    %190 = vector.shape_cast %185 : vector<1x256xi1> to vector<1x256xi1>
    %191 = vector.broadcast %190 : vector<1x256xi1> to vector<2x256xi1>
    %192 = vector.broadcast %cst_27 : f32 to vector<2x256xf32>
    %193 = arith.select %191, %176, %192 : vector<2x256xi1>, vector<2x256xf32>
    %c2 = arith.constant 2 : index
    %194 = memref.load %arg3[%c2] : memref<98xf32, #tpu.memory_space<smem>>
    %195 = vector.broadcast %194 : f32 to vector<2x256xf32>
    %196 = arith.mulf %195, %189 : vector<2x256xf32>
    %c51 = arith.constant 51 : index
    %197 = memref.load %arg3[%c51] : memref<98xf32, #tpu.memory_space<smem>>
    %198 = vector.broadcast %197 : f32 to vector<2x256xf32>
    %199 = arith.mulf %198, %193 : vector<2x256xf32>
    %200 = arith.addf %196, %199 : vector<2x256xf32>
    %201 = arith.addf %122, %200 : vector<2x256xf32>
    %c9 = arith.constant 9 : index
    %202 = memref.load %arg3[%c9] : memref<98xf32, #tpu.memory_space<smem>>
    %203 = vector.broadcast %202 : f32 to vector<2x256xf32>
    %204 = arith.mulf %203, %189 : vector<2x256xf32>
    %c58 = arith.constant 58 : index
    %205 = memref.load %arg3[%c58] : memref<98xf32, #tpu.memory_space<smem>>
    %206 = vector.broadcast %205 : f32 to vector<2x256xf32>
    %207 = arith.mulf %206, %193 : vector<2x256xf32>
    %208 = arith.addf %204, %207 : vector<2x256xf32>
    %209 = arith.addf %130, %208 : vector<2x256xf32>
    %c16 = arith.constant 16 : index
    %210 = memref.load %arg3[%c16] : memref<98xf32, #tpu.memory_space<smem>>
    %211 = vector.broadcast %210 : f32 to vector<2x256xf32>
    %212 = arith.mulf %211, %189 : vector<2x256xf32>
    %c65 = arith.constant 65 : index
    %213 = memref.load %arg3[%c65] : memref<98xf32, #tpu.memory_space<smem>>
    %214 = vector.broadcast %213 : f32 to vector<2x256xf32>
    %215 = arith.mulf %214, %193 : vector<2x256xf32>
    %216 = arith.addf %212, %215 : vector<2x256xf32>
    %217 = arith.addf %138, %216 : vector<2x256xf32>
    %c23 = arith.constant 23 : index
    %218 = memref.load %arg3[%c23] : memref<98xf32, #tpu.memory_space<smem>>
    %219 = vector.broadcast %218 : f32 to vector<2x256xf32>
    %220 = arith.mulf %219, %189 : vector<2x256xf32>
    %c72 = arith.constant 72 : index
    %221 = memref.load %arg3[%c72] : memref<98xf32, #tpu.memory_space<smem>>
    %222 = vector.broadcast %221 : f32 to vector<2x256xf32>
    %223 = arith.mulf %222, %193 : vector<2x256xf32>
    %224 = arith.addf %220, %223 : vector<2x256xf32>
    %225 = arith.addf %146, %224 : vector<2x256xf32>
    %c30 = arith.constant 30 : index
    %226 = memref.load %arg3[%c30] : memref<98xf32, #tpu.memory_space<smem>>
    %227 = vector.broadcast %226 : f32 to vector<2x256xf32>
    %228 = arith.mulf %227, %189 : vector<2x256xf32>
    %c79 = arith.constant 79 : index
    %229 = memref.load %arg3[%c79] : memref<98xf32, #tpu.memory_space<smem>>
    %230 = vector.broadcast %229 : f32 to vector<2x256xf32>
    %231 = arith.mulf %230, %193 : vector<2x256xf32>
    %232 = arith.addf %228, %231 : vector<2x256xf32>
    %233 = arith.addf %154, %232 : vector<2x256xf32>
    %c37 = arith.constant 37 : index
    %234 = memref.load %arg3[%c37] : memref<98xf32, #tpu.memory_space<smem>>
    %235 = vector.broadcast %234 : f32 to vector<2x256xf32>
    %236 = arith.mulf %235, %189 : vector<2x256xf32>
    %c86 = arith.constant 86 : index
    %237 = memref.load %arg3[%c86] : memref<98xf32, #tpu.memory_space<smem>>
    %238 = vector.broadcast %237 : f32 to vector<2x256xf32>
    %239 = arith.mulf %238, %193 : vector<2x256xf32>
    %240 = arith.addf %236, %239 : vector<2x256xf32>
    %241 = arith.addf %162, %240 : vector<2x256xf32>
    %c44 = arith.constant 44 : index
    %242 = memref.load %arg3[%c44] : memref<98xf32, #tpu.memory_space<smem>>
    %243 = vector.broadcast %242 : f32 to vector<2x256xf32>
    %244 = arith.mulf %243, %189 : vector<2x256xf32>
    %c93 = arith.constant 93 : index
    %245 = memref.load %arg3[%c93] : memref<98xf32, #tpu.memory_space<smem>>
    %246 = vector.broadcast %245 : f32 to vector<2x256xf32>
    %247 = arith.mulf %246, %193 : vector<2x256xf32>
    %248 = arith.addf %244, %247 : vector<2x256xf32>
    %249 = arith.addf %170, %248 : vector<2x256xf32>
    %c3 = arith.constant 3 : index
    %250 = memref.load %arg3[%c3] : memref<98xf32, #tpu.memory_space<smem>>
    %251 = vector.broadcast %250 : f32 to vector<2x256xf32>
    %252 = arith.mulf %251, %1 : vector<2x256xf32>
    %c52 = arith.constant 52 : index
    %253 = memref.load %arg3[%c52] : memref<98xf32, #tpu.memory_space<smem>>
    %254 = vector.broadcast %253 : f32 to vector<2x256xf32>
    %255 = arith.mulf %254, %2 : vector<2x256xf32>
    %256 = arith.addf %252, %255 : vector<2x256xf32>
    %257 = arith.addf %201, %256 : vector<2x256xf32>
    %c10 = arith.constant 10 : index
    %258 = memref.load %arg3[%c10] : memref<98xf32, #tpu.memory_space<smem>>
    %259 = vector.broadcast %258 : f32 to vector<2x256xf32>
    %260 = arith.mulf %259, %1 : vector<2x256xf32>
    %c59 = arith.constant 59 : index
    %261 = memref.load %arg3[%c59] : memref<98xf32, #tpu.memory_space<smem>>
    %262 = vector.broadcast %261 : f32 to vector<2x256xf32>
    %263 = arith.mulf %262, %2 : vector<2x256xf32>
    %264 = arith.addf %260, %263 : vector<2x256xf32>
    %265 = arith.addf %209, %264 : vector<2x256xf32>
    %c17 = arith.constant 17 : index
    %266 = memref.load %arg3[%c17] : memref<98xf32, #tpu.memory_space<smem>>
    %267 = vector.broadcast %266 : f32 to vector<2x256xf32>
    %268 = arith.mulf %267, %1 : vector<2x256xf32>
    %c66 = arith.constant 66 : index
    %269 = memref.load %arg3[%c66] : memref<98xf32, #tpu.memory_space<smem>>
    %270 = vector.broadcast %269 : f32 to vector<2x256xf32>
    %271 = arith.mulf %270, %2 : vector<2x256xf32>
    %272 = arith.addf %268, %271 : vector<2x256xf32>
    %273 = arith.addf %217, %272 : vector<2x256xf32>
    %c24 = arith.constant 24 : index
    %274 = memref.load %arg3[%c24] : memref<98xf32, #tpu.memory_space<smem>>
    %275 = vector.broadcast %274 : f32 to vector<2x256xf32>
    %276 = arith.mulf %275, %1 : vector<2x256xf32>
    %c73 = arith.constant 73 : index
    %277 = memref.load %arg3[%c73] : memref<98xf32, #tpu.memory_space<smem>>
    %278 = vector.broadcast %277 : f32 to vector<2x256xf32>
    %279 = arith.mulf %278, %2 : vector<2x256xf32>
    %280 = arith.addf %276, %279 : vector<2x256xf32>
    %281 = arith.addf %225, %280 : vector<2x256xf32>
    %c31 = arith.constant 31 : index
    %282 = memref.load %arg3[%c31] : memref<98xf32, #tpu.memory_space<smem>>
    %283 = vector.broadcast %282 : f32 to vector<2x256xf32>
    %284 = arith.mulf %283, %1 : vector<2x256xf32>
    %c80 = arith.constant 80 : index
    %285 = memref.load %arg3[%c80] : memref<98xf32, #tpu.memory_space<smem>>
    %286 = vector.broadcast %285 : f32 to vector<2x256xf32>
    %287 = arith.mulf %286, %2 : vector<2x256xf32>
    %288 = arith.addf %284, %287 : vector<2x256xf32>
    %289 = arith.addf %233, %288 : vector<2x256xf32>
    %c38 = arith.constant 38 : index
    %290 = memref.load %arg3[%c38] : memref<98xf32, #tpu.memory_space<smem>>
    %291 = vector.broadcast %290 : f32 to vector<2x256xf32>
    %292 = arith.mulf %291, %1 : vector<2x256xf32>
    %c87 = arith.constant 87 : index
    %293 = memref.load %arg3[%c87] : memref<98xf32, #tpu.memory_space<smem>>
    %294 = vector.broadcast %293 : f32 to vector<2x256xf32>
    %295 = arith.mulf %294, %2 : vector<2x256xf32>
    %296 = arith.addf %292, %295 : vector<2x256xf32>
    %297 = arith.addf %241, %296 : vector<2x256xf32>
    %c45 = arith.constant 45 : index
    %298 = memref.load %arg3[%c45] : memref<98xf32, #tpu.memory_space<smem>>
    %299 = vector.broadcast %298 : f32 to vector<2x256xf32>
    %300 = arith.mulf %299, %1 : vector<2x256xf32>
    %c94 = arith.constant 94 : index
    %301 = memref.load %arg3[%c94] : memref<98xf32, #tpu.memory_space<smem>>
    %302 = vector.broadcast %301 : f32 to vector<2x256xf32>
    %303 = arith.mulf %302, %2 : vector<2x256xf32>
    %304 = arith.addf %300, %303 : vector<2x256xf32>
    %305 = arith.addf %249, %304 : vector<2x256xf32>
    %306 = vector.extract_strided_slice %1 {offsets = [0, 1], sizes = [2, 255], strides = [1, 1]} : vector<2x256xf32> to vector<2x255xf32>
    %cst_28 = arith.constant 0.000000e+00 : f32
    %307 = vector.broadcast %cst_28 : f32 to vector<2x1xf32>
    %308 = tpu.concatenate %306, %307 in 1 : vector<2x255xf32>, vector<2x1xf32> -> vector<2x256xf32>
    %309 = vector.extract_strided_slice %2 {offsets = [0, 1], sizes = [2, 255], strides = [1, 1]} : vector<2x256xf32> to vector<2x255xf32>
    %cst_29 = arith.constant 0.000000e+00 : f32
    %310 = vector.broadcast %cst_29 : f32 to vector<2x1xf32>
    %311 = tpu.concatenate %309, %310 in 1 : vector<2x255xf32>, vector<2x1xf32> -> vector<2x256xf32>
    %c1_i32_30 = arith.constant 1 : i32
    %312 = vector.broadcast %c1_i32_30 : i32 to vector<1x256xi32>
    %313 = arith.addi %19, %312 : vector<1x256xi32>
    %c0_i32_31 = arith.constant 0 : i32
    %314 = vector.broadcast %c0_i32_31 : i32 to vector<1x256xi32>
    %315 = arith.cmpi sge, %313, %314 : vector<1x256xi32>
    %c1_i32_32 = arith.constant 1 : i32
    %316 = vector.broadcast %c1_i32_32 : i32 to vector<1x256xi32>
    %317 = arith.addi %19, %316 : vector<1x256xi32>
    %c16_i32_33 = arith.constant 16 : i32
    %318 = vector.broadcast %c16_i32_33 : i32 to vector<1x256xi32>
    %319 = arith.cmpi slt, %317, %318 : vector<1x256xi32>
    %320 = arith.andi %315, %319 : vector<1x256xi1>
    %cst_34 = arith.constant 0.000000e+00 : f32
    %321 = vector.shape_cast %320 : vector<1x256xi1> to vector<1x256xi1>
    %322 = vector.broadcast %321 : vector<1x256xi1> to vector<2x256xi1>
    %323 = vector.broadcast %cst_34 : f32 to vector<2x256xf32>
    %324 = arith.select %322, %308, %323 : vector<2x256xi1>, vector<2x256xf32>
    %cst_35 = arith.constant 0.000000e+00 : f32
    %325 = vector.shape_cast %320 : vector<1x256xi1> to vector<1x256xi1>
    %326 = vector.broadcast %325 : vector<1x256xi1> to vector<2x256xi1>
    %327 = vector.broadcast %cst_35 : f32 to vector<2x256xf32>
    %328 = arith.select %326, %311, %327 : vector<2x256xi1>, vector<2x256xf32>
    %c4 = arith.constant 4 : index
    %329 = memref.load %arg3[%c4] : memref<98xf32, #tpu.memory_space<smem>>
    %330 = vector.broadcast %329 : f32 to vector<2x256xf32>
    %331 = arith.mulf %330, %324 : vector<2x256xf32>
    %c53 = arith.constant 53 : index
    %332 = memref.load %arg3[%c53] : memref<98xf32, #tpu.memory_space<smem>>
    %333 = vector.broadcast %332 : f32 to vector<2x256xf32>
    %334 = arith.mulf %333, %328 : vector<2x256xf32>
    %335 = arith.addf %331, %334 : vector<2x256xf32>
    %336 = arith.addf %257, %335 : vector<2x256xf32>
    %c11 = arith.constant 11 : index
    %337 = memref.load %arg3[%c11] : memref<98xf32, #tpu.memory_space<smem>>
    %338 = vector.broadcast %337 : f32 to vector<2x256xf32>
    %339 = arith.mulf %338, %324 : vector<2x256xf32>
    %c60 = arith.constant 60 : index
    %340 = memref.load %arg3[%c60] : memref<98xf32, #tpu.memory_space<smem>>
    %341 = vector.broadcast %340 : f32 to vector<2x256xf32>
    %342 = arith.mulf %341, %328 : vector<2x256xf32>
    %343 = arith.addf %339, %342 : vector<2x256xf32>
    %344 = arith.addf %265, %343 : vector<2x256xf32>
    %c18 = arith.constant 18 : index
    %345 = memref.load %arg3[%c18] : memref<98xf32, #tpu.memory_space<smem>>
    %346 = vector.broadcast %345 : f32 to vector<2x256xf32>
    %347 = arith.mulf %346, %324 : vector<2x256xf32>
    %c67 = arith.constant 67 : index
    %348 = memref.load %arg3[%c67] : memref<98xf32, #tpu.memory_space<smem>>
    %349 = vector.broadcast %348 : f32 to vector<2x256xf32>
    %350 = arith.mulf %349, %328 : vector<2x256xf32>
    %351 = arith.addf %347, %350 : vector<2x256xf32>
    %352 = arith.addf %273, %351 : vector<2x256xf32>
    %c25 = arith.constant 25 : index
    %353 = memref.load %arg3[%c25] : memref<98xf32, #tpu.memory_space<smem>>
    %354 = vector.broadcast %353 : f32 to vector<2x256xf32>
    %355 = arith.mulf %354, %324 : vector<2x256xf32>
    %c74 = arith.constant 74 : index
    %356 = memref.load %arg3[%c74] : memref<98xf32, #tpu.memory_space<smem>>
    %357 = vector.broadcast %356 : f32 to vector<2x256xf32>
    %358 = arith.mulf %357, %328 : vector<2x256xf32>
    %359 = arith.addf %355, %358 : vector<2x256xf32>
    %360 = arith.addf %281, %359 : vector<2x256xf32>
    %c32 = arith.constant 32 : index
    %361 = memref.load %arg3[%c32] : memref<98xf32, #tpu.memory_space<smem>>
    %362 = vector.broadcast %361 : f32 to vector<2x256xf32>
    %363 = arith.mulf %362, %324 : vector<2x256xf32>
    %c81 = arith.constant 81 : index
    %364 = memref.load %arg3[%c81] : memref<98xf32, #tpu.memory_space<smem>>
    %365 = vector.broadcast %364 : f32 to vector<2x256xf32>
    %366 = arith.mulf %365, %328 : vector<2x256xf32>
    %367 = arith.addf %363, %366 : vector<2x256xf32>
    %368 = arith.addf %289, %367 : vector<2x256xf32>
    %c39 = arith.constant 39 : index
    %369 = memref.load %arg3[%c39] : memref<98xf32, #tpu.memory_space<smem>>
    %370 = vector.broadcast %369 : f32 to vector<2x256xf32>
    %371 = arith.mulf %370, %324 : vector<2x256xf32>
    %c88 = arith.constant 88 : index
    %372 = memref.load %arg3[%c88] : memref<98xf32, #tpu.memory_space<smem>>
    %373 = vector.broadcast %372 : f32 to vector<2x256xf32>
    %374 = arith.mulf %373, %328 : vector<2x256xf32>
    %375 = arith.addf %371, %374 : vector<2x256xf32>
    %376 = arith.addf %297, %375 : vector<2x256xf32>
    %c46 = arith.constant 46 : index
    %377 = memref.load %arg3[%c46] : memref<98xf32, #tpu.memory_space<smem>>
    %378 = vector.broadcast %377 : f32 to vector<2x256xf32>
    %379 = arith.mulf %378, %324 : vector<2x256xf32>
    %c95 = arith.constant 95 : index
    %380 = memref.load %arg3[%c95] : memref<98xf32, #tpu.memory_space<smem>>
    %381 = vector.broadcast %380 : f32 to vector<2x256xf32>
    %382 = arith.mulf %381, %328 : vector<2x256xf32>
    %383 = arith.addf %379, %382 : vector<2x256xf32>
    %384 = arith.addf %305, %383 : vector<2x256xf32>
    %385 = vector.extract_strided_slice %1 {offsets = [0, 2], sizes = [2, 254], strides = [1, 1]} : vector<2x256xf32> to vector<2x254xf32>
    %cst_36 = arith.constant 0.000000e+00 : f32
    %386 = vector.broadcast %cst_36 : f32 to vector<2x2xf32>
    %387 = tpu.concatenate %385, %386 in 1 : vector<2x254xf32>, vector<2x2xf32> -> vector<2x256xf32>
    %388 = vector.extract_strided_slice %2 {offsets = [0, 2], sizes = [2, 254], strides = [1, 1]} : vector<2x256xf32> to vector<2x254xf32>
    %cst_37 = arith.constant 0.000000e+00 : f32
    %389 = vector.broadcast %cst_37 : f32 to vector<2x2xf32>
    %390 = tpu.concatenate %388, %389 in 1 : vector<2x254xf32>, vector<2x2xf32> -> vector<2x256xf32>
    %c2_i32 = arith.constant 2 : i32
    %391 = vector.broadcast %c2_i32 : i32 to vector<1x256xi32>
    %392 = arith.addi %19, %391 : vector<1x256xi32>
    %c0_i32_38 = arith.constant 0 : i32
    %393 = vector.broadcast %c0_i32_38 : i32 to vector<1x256xi32>
    %394 = arith.cmpi sge, %392, %393 : vector<1x256xi32>
    %c2_i32_39 = arith.constant 2 : i32
    %395 = vector.broadcast %c2_i32_39 : i32 to vector<1x256xi32>
    %396 = arith.addi %19, %395 : vector<1x256xi32>
    %c16_i32_40 = arith.constant 16 : i32
    %397 = vector.broadcast %c16_i32_40 : i32 to vector<1x256xi32>
    %398 = arith.cmpi slt, %396, %397 : vector<1x256xi32>
    %399 = arith.andi %394, %398 : vector<1x256xi1>
    %cst_41 = arith.constant 0.000000e+00 : f32
    %400 = vector.shape_cast %399 : vector<1x256xi1> to vector<1x256xi1>
    %401 = vector.broadcast %400 : vector<1x256xi1> to vector<2x256xi1>
    %402 = vector.broadcast %cst_41 : f32 to vector<2x256xf32>
    %403 = arith.select %401, %387, %402 : vector<2x256xi1>, vector<2x256xf32>
    %cst_42 = arith.constant 0.000000e+00 : f32
    %404 = vector.shape_cast %399 : vector<1x256xi1> to vector<1x256xi1>
    %405 = vector.broadcast %404 : vector<1x256xi1> to vector<2x256xi1>
    %406 = vector.broadcast %cst_42 : f32 to vector<2x256xf32>
    %407 = arith.select %405, %390, %406 : vector<2x256xi1>, vector<2x256xf32>
    %c5 = arith.constant 5 : index
    %408 = memref.load %arg3[%c5] : memref<98xf32, #tpu.memory_space<smem>>
    %409 = vector.broadcast %408 : f32 to vector<2x256xf32>
    %410 = arith.mulf %409, %403 : vector<2x256xf32>
    %c54 = arith.constant 54 : index
    %411 = memref.load %arg3[%c54] : memref<98xf32, #tpu.memory_space<smem>>
    %412 = vector.broadcast %411 : f32 to vector<2x256xf32>
    %413 = arith.mulf %412, %407 : vector<2x256xf32>
    %414 = arith.addf %410, %413 : vector<2x256xf32>
    %415 = arith.addf %336, %414 : vector<2x256xf32>
    %c12 = arith.constant 12 : index
    %416 = memref.load %arg3[%c12] : memref<98xf32, #tpu.memory_space<smem>>
    %417 = vector.broadcast %416 : f32 to vector<2x256xf32>
    %418 = arith.mulf %417, %403 : vector<2x256xf32>
    %c61 = arith.constant 61 : index
    %419 = memref.load %arg3[%c61] : memref<98xf32, #tpu.memory_space<smem>>
    %420 = vector.broadcast %419 : f32 to vector<2x256xf32>
    %421 = arith.mulf %420, %407 : vector<2x256xf32>
    %422 = arith.addf %418, %421 : vector<2x256xf32>
    %423 = arith.addf %344, %422 : vector<2x256xf32>
    %c19 = arith.constant 19 : index
    %424 = memref.load %arg3[%c19] : memref<98xf32, #tpu.memory_space<smem>>
    %425 = vector.broadcast %424 : f32 to vector<2x256xf32>
    %426 = arith.mulf %425, %403 : vector<2x256xf32>
    %c68 = arith.constant 68 : index
    %427 = memref.load %arg3[%c68] : memref<98xf32, #tpu.memory_space<smem>>
    %428 = vector.broadcast %427 : f32 to vector<2x256xf32>
    %429 = arith.mulf %428, %407 : vector<2x256xf32>
    %430 = arith.addf %426, %429 : vector<2x256xf32>
    %431 = arith.addf %352, %430 : vector<2x256xf32>
    %c26 = arith.constant 26 : index
    %432 = memref.load %arg3[%c26] : memref<98xf32, #tpu.memory_space<smem>>
    %433 = vector.broadcast %432 : f32 to vector<2x256xf32>
    %434 = arith.mulf %433, %403 : vector<2x256xf32>
    %c75 = arith.constant 75 : index
    %435 = memref.load %arg3[%c75] : memref<98xf32, #tpu.memory_space<smem>>
    %436 = vector.broadcast %435 : f32 to vector<2x256xf32>
    %437 = arith.mulf %436, %407 : vector<2x256xf32>
    %438 = arith.addf %434, %437 : vector<2x256xf32>
    %439 = arith.addf %360, %438 : vector<2x256xf32>
    %c33 = arith.constant 33 : index
    %440 = memref.load %arg3[%c33] : memref<98xf32, #tpu.memory_space<smem>>
    %441 = vector.broadcast %440 : f32 to vector<2x256xf32>
    %442 = arith.mulf %441, %403 : vector<2x256xf32>
    %c82 = arith.constant 82 : index
    %443 = memref.load %arg3[%c82] : memref<98xf32, #tpu.memory_space<smem>>
    %444 = vector.broadcast %443 : f32 to vector<2x256xf32>
    %445 = arith.mulf %444, %407 : vector<2x256xf32>
    %446 = arith.addf %442, %445 : vector<2x256xf32>
    %447 = arith.addf %368, %446 : vector<2x256xf32>
    %c40 = arith.constant 40 : index
    %448 = memref.load %arg3[%c40] : memref<98xf32, #tpu.memory_space<smem>>
    %449 = vector.broadcast %448 : f32 to vector<2x256xf32>
    %450 = arith.mulf %449, %403 : vector<2x256xf32>
    %c89 = arith.constant 89 : index
    %451 = memref.load %arg3[%c89] : memref<98xf32, #tpu.memory_space<smem>>
    %452 = vector.broadcast %451 : f32 to vector<2x256xf32>
    %453 = arith.mulf %452, %407 : vector<2x256xf32>
    %454 = arith.addf %450, %453 : vector<2x256xf32>
    %455 = arith.addf %376, %454 : vector<2x256xf32>
    %c47 = arith.constant 47 : index
    %456 = memref.load %arg3[%c47] : memref<98xf32, #tpu.memory_space<smem>>
    %457 = vector.broadcast %456 : f32 to vector<2x256xf32>
    %458 = arith.mulf %457, %403 : vector<2x256xf32>
    %c96 = arith.constant 96 : index
    %459 = memref.load %arg3[%c96] : memref<98xf32, #tpu.memory_space<smem>>
    %460 = vector.broadcast %459 : f32 to vector<2x256xf32>
    %461 = arith.mulf %460, %407 : vector<2x256xf32>
    %462 = arith.addf %458, %461 : vector<2x256xf32>
    %463 = arith.addf %384, %462 : vector<2x256xf32>
    %464 = vector.extract_strided_slice %1 {offsets = [0, 3], sizes = [2, 253], strides = [1, 1]} : vector<2x256xf32> to vector<2x253xf32>
    %cst_43 = arith.constant 0.000000e+00 : f32
    %465 = vector.broadcast %cst_43 : f32 to vector<2x3xf32>
    %466 = tpu.concatenate %464, %465 in 1 : vector<2x253xf32>, vector<2x3xf32> -> vector<2x256xf32>
    %467 = vector.extract_strided_slice %2 {offsets = [0, 3], sizes = [2, 253], strides = [1, 1]} : vector<2x256xf32> to vector<2x253xf32>
    %cst_44 = arith.constant 0.000000e+00 : f32
    %468 = vector.broadcast %cst_44 : f32 to vector<2x3xf32>
    %469 = tpu.concatenate %467, %468 in 1 : vector<2x253xf32>, vector<2x3xf32> -> vector<2x256xf32>
    %c3_i32 = arith.constant 3 : i32
    %470 = vector.broadcast %c3_i32 : i32 to vector<1x256xi32>
    %471 = arith.addi %19, %470 : vector<1x256xi32>
    %c0_i32_45 = arith.constant 0 : i32
    %472 = vector.broadcast %c0_i32_45 : i32 to vector<1x256xi32>
    %473 = arith.cmpi sge, %471, %472 : vector<1x256xi32>
    %c3_i32_46 = arith.constant 3 : i32
    %474 = vector.broadcast %c3_i32_46 : i32 to vector<1x256xi32>
    %475 = arith.addi %19, %474 : vector<1x256xi32>
    %c16_i32_47 = arith.constant 16 : i32
    %476 = vector.broadcast %c16_i32_47 : i32 to vector<1x256xi32>
    %477 = arith.cmpi slt, %475, %476 : vector<1x256xi32>
    %478 = arith.andi %473, %477 : vector<1x256xi1>
    %cst_48 = arith.constant 0.000000e+00 : f32
    %479 = vector.shape_cast %478 : vector<1x256xi1> to vector<1x256xi1>
    %480 = vector.broadcast %479 : vector<1x256xi1> to vector<2x256xi1>
    %481 = vector.broadcast %cst_48 : f32 to vector<2x256xf32>
    %482 = arith.select %480, %466, %481 : vector<2x256xi1>, vector<2x256xf32>
    %cst_49 = arith.constant 0.000000e+00 : f32
    %483 = vector.shape_cast %478 : vector<1x256xi1> to vector<1x256xi1>
    %484 = vector.broadcast %483 : vector<1x256xi1> to vector<2x256xi1>
    %485 = vector.broadcast %cst_49 : f32 to vector<2x256xf32>
    %486 = arith.select %484, %469, %485 : vector<2x256xi1>, vector<2x256xf32>
    %c6 = arith.constant 6 : index
    %487 = memref.load %arg3[%c6] : memref<98xf32, #tpu.memory_space<smem>>
    %488 = vector.broadcast %487 : f32 to vector<2x256xf32>
    %489 = arith.mulf %488, %482 : vector<2x256xf32>
    %c55 = arith.constant 55 : index
    %490 = memref.load %arg3[%c55] : memref<98xf32, #tpu.memory_space<smem>>
    %491 = vector.broadcast %490 : f32 to vector<2x256xf32>
    %492 = arith.mulf %491, %486 : vector<2x256xf32>
    %493 = arith.addf %489, %492 : vector<2x256xf32>
    %494 = arith.addf %415, %493 : vector<2x256xf32>
    %c13 = arith.constant 13 : index
    %495 = memref.load %arg3[%c13] : memref<98xf32, #tpu.memory_space<smem>>
    %496 = vector.broadcast %495 : f32 to vector<2x256xf32>
    %497 = arith.mulf %496, %482 : vector<2x256xf32>
    %c62 = arith.constant 62 : index
    %498 = memref.load %arg3[%c62] : memref<98xf32, #tpu.memory_space<smem>>
    %499 = vector.broadcast %498 : f32 to vector<2x256xf32>
    %500 = arith.mulf %499, %486 : vector<2x256xf32>
    %501 = arith.addf %497, %500 : vector<2x256xf32>
    %502 = arith.addf %423, %501 : vector<2x256xf32>
    %c20 = arith.constant 20 : index
    %503 = memref.load %arg3[%c20] : memref<98xf32, #tpu.memory_space<smem>>
    %504 = vector.broadcast %503 : f32 to vector<2x256xf32>
    %505 = arith.mulf %504, %482 : vector<2x256xf32>
    %c69 = arith.constant 69 : index
    %506 = memref.load %arg3[%c69] : memref<98xf32, #tpu.memory_space<smem>>
    %507 = vector.broadcast %506 : f32 to vector<2x256xf32>
    %508 = arith.mulf %507, %486 : vector<2x256xf32>
    %509 = arith.addf %505, %508 : vector<2x256xf32>
    %510 = arith.addf %431, %509 : vector<2x256xf32>
    %c27 = arith.constant 27 : index
    %511 = memref.load %arg3[%c27] : memref<98xf32, #tpu.memory_space<smem>>
    %512 = vector.broadcast %511 : f32 to vector<2x256xf32>
    %513 = arith.mulf %512, %482 : vector<2x256xf32>
    %c76 = arith.constant 76 : index
    %514 = memref.load %arg3[%c76] : memref<98xf32, #tpu.memory_space<smem>>
    %515 = vector.broadcast %514 : f32 to vector<2x256xf32>
    %516 = arith.mulf %515, %486 : vector<2x256xf32>
    %517 = arith.addf %513, %516 : vector<2x256xf32>
    %518 = arith.addf %439, %517 : vector<2x256xf32>
    %c34 = arith.constant 34 : index
    %519 = memref.load %arg3[%c34] : memref<98xf32, #tpu.memory_space<smem>>
    %520 = vector.broadcast %519 : f32 to vector<2x256xf32>
    %521 = arith.mulf %520, %482 : vector<2x256xf32>
    %c83 = arith.constant 83 : index
    %522 = memref.load %arg3[%c83] : memref<98xf32, #tpu.memory_space<smem>>
    %523 = vector.broadcast %522 : f32 to vector<2x256xf32>
    %524 = arith.mulf %523, %486 : vector<2x256xf32>
    %525 = arith.addf %521, %524 : vector<2x256xf32>
    %526 = arith.addf %447, %525 : vector<2x256xf32>
    %c41 = arith.constant 41 : index
    %527 = memref.load %arg3[%c41] : memref<98xf32, #tpu.memory_space<smem>>
    %528 = vector.broadcast %527 : f32 to vector<2x256xf32>
    %529 = arith.mulf %528, %482 : vector<2x256xf32>
    %c90 = arith.constant 90 : index
    %530 = memref.load %arg3[%c90] : memref<98xf32, #tpu.memory_space<smem>>
    %531 = vector.broadcast %530 : f32 to vector<2x256xf32>
    %532 = arith.mulf %531, %486 : vector<2x256xf32>
    %533 = arith.addf %529, %532 : vector<2x256xf32>
    %534 = arith.addf %455, %533 : vector<2x256xf32>
    %c48 = arith.constant 48 : index
    %535 = memref.load %arg3[%c48] : memref<98xf32, #tpu.memory_space<smem>>
    %536 = vector.broadcast %535 : f32 to vector<2x256xf32>
    %537 = arith.mulf %536, %482 : vector<2x256xf32>
    %c97 = arith.constant 97 : index
    %538 = memref.load %arg3[%c97] : memref<98xf32, #tpu.memory_space<smem>>
    %539 = vector.broadcast %538 : f32 to vector<2x256xf32>
    %540 = arith.mulf %539, %486 : vector<2x256xf32>
    %541 = arith.addf %537, %540 : vector<2x256xf32>
    %542 = arith.addf %463, %541 : vector<2x256xf32>
    %cst_50 = arith.constant 0.000000e+00 : f32
    %543 = vector.broadcast %cst_50 : f32 to vector<2x48xf32>
    %544 = vector.extract_strided_slice %494 {offsets = [0, 0], sizes = [2, 208], strides = [1, 1]} : vector<2x256xf32> to vector<2x208xf32>
    %545 = tpu.concatenate %543, %544 in 1 : vector<2x48xf32>, vector<2x208xf32> -> vector<2x256xf32>
    %cst_51 = arith.constant 0.000000e+00 : f32
    %546 = vector.broadcast %cst_51 : f32 to vector<2x32xf32>
    %547 = vector.extract_strided_slice %502 {offsets = [0, 0], sizes = [2, 224], strides = [1, 1]} : vector<2x256xf32> to vector<2x224xf32>
    %548 = tpu.concatenate %546, %547 in 1 : vector<2x32xf32>, vector<2x224xf32> -> vector<2x256xf32>
    %549 = arith.addf %545, %548 : vector<2x256xf32>
    %cst_52 = arith.constant 0.000000e+00 : f32
    %550 = vector.broadcast %cst_52 : f32 to vector<2x16xf32>
    %551 = vector.extract_strided_slice %510 {offsets = [0, 0], sizes = [2, 240], strides = [1, 1]} : vector<2x256xf32> to vector<2x240xf32>
    %552 = tpu.concatenate %550, %551 in 1 : vector<2x16xf32>, vector<2x240xf32> -> vector<2x256xf32>
    %553 = arith.addf %549, %552 : vector<2x256xf32>
    %554 = arith.addf %553, %518 : vector<2x256xf32>
    %555 = vector.extract_strided_slice %526 {offsets = [0, 16], sizes = [2, 240], strides = [1, 1]} : vector<2x256xf32> to vector<2x240xf32>
    %cst_53 = arith.constant 0.000000e+00 : f32
    %556 = vector.broadcast %cst_53 : f32 to vector<2x16xf32>
    %557 = tpu.concatenate %555, %556 in 1 : vector<2x240xf32>, vector<2x16xf32> -> vector<2x256xf32>
    %558 = arith.addf %554, %557 : vector<2x256xf32>
    %559 = vector.extract_strided_slice %534 {offsets = [0, 32], sizes = [2, 224], strides = [1, 1]} : vector<2x256xf32> to vector<2x224xf32>
    %cst_54 = arith.constant 0.000000e+00 : f32
    %560 = vector.broadcast %cst_54 : f32 to vector<2x32xf32>
    %561 = tpu.concatenate %559, %560 in 1 : vector<2x224xf32>, vector<2x32xf32> -> vector<2x256xf32>
    %562 = arith.addf %558, %561 : vector<2x256xf32>
    %563 = vector.extract_strided_slice %542 {offsets = [0, 48], sizes = [2, 208], strides = [1, 1]} : vector<2x256xf32> to vector<2x208xf32>
    %cst_55 = arith.constant 0.000000e+00 : f32
    %564 = vector.broadcast %cst_55 : f32 to vector<2x48xf32>
    %565 = tpu.concatenate %563, %564 in 1 : vector<2x208xf32>, vector<2x48xf32> -> vector<2x256xf32>
    %566 = arith.addf %562, %565 : vector<2x256xf32>
    %567 = arith.negf %566 : vector<2x256xf32>
    %568 = math.exp %567 : vector<2x256xf32>
    %cst_56 = arith.constant 1.000000e+00 : f32
    %569 = vector.broadcast %cst_56 : f32 to vector<2x256xf32>
    %570 = arith.addf %569, %568 : vector<2x256xf32>
    %571 = arith.divf %569, %570 : vector<2x256xf32>
    %c0_57 = arith.constant 0 : index
    %c0_58 = arith.constant 0 : index
    %c0_59 = arith.constant 0 : index
    %572 = vector.load %arg4[%c0_57, %c0_58, %c0_59] : memref<2x1x256xf32, #tpu.memory_space<vmem>>, vector<2x1x256xf32>
    %573 = vector.shape_cast %572 : vector<2x1x256xf32> to vector<2x256xf32>
    %574 = vector.shape_cast %571 : vector<2x256xf32> to vector<2x1x256xf32>
    tpu.vector_store %arg4[%c0_57, %c0_58, %c0_59], %574 {strides = array<i32>} : memref<2x1x256xf32, #tpu.memory_space<vmem>>, vector<2x1x256xf32>,
    return
  }
  func.func @transform_0(%arg0: i32, %arg1: i32) -> (i32, i32, i32) {
    %c0_i32 = arith.constant 0 : i32
    %c0_i32_0 = arith.constant 0 : i32
    return %arg0, %arg1, %c0_i32 : i32, i32, i32
  }
  func.func @transform_1(%arg0: i32, %arg1: i32) -> i32 {
    %c0_i32 = arith.constant 0 : i32
    %c0_i32_0 = arith.constant 0 : i32
    return %c0_i32 : i32
  }
  func.func @transform_2(%arg0: i32, %arg1: i32) -> (i32, i32, i32) {
    %c0_i32 = arith.constant 0 : i32
    %c0_i32_0 = arith.constant 0 : i32
    %c0_i32_1 = arith.constant 0 : i32
    return %arg0, %c0_i32, %c0_i32_0 : i32, i32, i32
  }
}

</mosaic_0001>

<llo_original>
// kernel: tpu_custom_call.1
$region0: #{tpu_custom_call.1}
  #allocation0 [shape = 'u32[]', space=smem, size = 0x4, offset = 0x4, fixed_abs, tag = 'smem constant byte address 0x4 - core index']
  #allocation1 [shape = 'u32[72,128]{1,0:T(1,128)}', space=vmem, size = 0x9000, scoped, tag = 'internal scratch']
  #allocation2 [shape = 'f32[2,256]{1,0:T(2,128)}', space=vmem, size = 0x800, scoped, tag = 'scratch operand']
  #allocation3 [shape = 'f32[2,256]{1,0:T(2,128)}', space=vmem, size = 0x800, scoped, tag = 'scratch operand']
  %s0 = inlined_call_operand.hbm [shape: f32[2,4,256], index: 0, kind: input, shape index: {}]
  %s1 = inlined_call_operand.hbm [shape: f32[98], index: 1, kind: input, shape index: {}]
  %s2 = inlined_call_operand.hbm [shape: f32[2,1,256], index: 2, kind: output, shape index: {}]
  %s3 = sld [smem:[#allocation0]]
  $region26: #{tpu_custom_call.1} parent=0
    _
  %s5 = ssub.s32 1, %s3
  %s6 = scalar_select 0, %s5, %s3
  $region1: #{tpu_custom_call.1} parent=0
    #allocation4 [shape = 'u8[8192]{0}', space=vmem, size = 0x2000, scoped, tag = 'input window, operand 0, single buffered']
    #allocation5 [shape = 's32[1]{0}', space=sflag, size = 0x4, scoped, tag = 'scoped memory for tpu_custom_call.1']
    #allocation6 [shape = 's32[1]{0}', space=sflag, size = 0x4, scoped, tag = 'scoped memory for tpu_custom_call.1']
    #allocation7 [shape = 's32[1]{0}', space=sflag, size = 0x4, scoped, tag = 'scoped memory for tpu_custom_call.1']
    #allocation8 [shape = 'u8[512]{0}', space=smem, size = 0x200, scoped, tag = 'input window, operand 1, single buffered']
    #allocation9 [shape = 'u8[2048]{0}', space=vmem, size = 0x800, scoped, tag = 'output window, operand 0, single buffered']
    %7 = vsyncpa [#allocation5], 0
    %8 = vsyncpa [#allocation7], 0
    %9 = vsyncpa [#allocation6], 0
    // Predicated region
    $region2: #{tpu_custom_call.1} parent=1 // pred_check
      _
    $region3: #{tpu_custom_call.1} parent=1 // pred_check_branch
      %11 = sbr.rel (0) target = $region5
    $region4: #{tpu_custom_call.1} parent=1 // pred_region
      %13 = vsyncadd [#allocation5], 0
      %s14 = sshll.u32 %s0, 4
      %s15 = int_to_ptr.hbm [resolvable:$true] %s14
      %s16 = sshll.u32 [#allocation4], 4
      %s17 = int_to_ptr.vmem [resolvable:$true] %s16
      %22 = dma.hbm_to_vmem [thread:$0]  %s15, 256, %s17, [#allocation5], 128, 128, 8
    $region5: #{tpu_custom_call.1} parent=1 // pred_fallthru
      _
    // Predicated region
    $region6: #{tpu_custom_call.1} parent=1 // pred_check
      _
    $region7: #{tpu_custom_call.1} parent=1 // pred_check_branch
      %24 = sbr.rel (0) target = $region9
    $region8: #{tpu_custom_call.1} parent=1 // pred_region
      %26 = vsyncadd [#allocation7], 0
      %s28 = sshll.u32 %s1, 4
      %s29 = int_to_ptr.hbm [resolvable:$true] %s28
      %31 = dma.hbm_to_smem %s29, 16, [#allocation8], [#allocation7]
    $region9: #{tpu_custom_call.1} parent=1 // pred_fallthru
      _
    // Predicated region
    $region10: #{tpu_custom_call.1} parent=1 // pred_check
      _
    $region11: #{tpu_custom_call.1} parent=1 // pred_check_branch
      %33 = sbr.rel (0) target = $region13
    $region12: #{tpu_custom_call.1} parent=1 // pred_region
      %35 = dma.done [#allocation5], 256
    $region13: #{tpu_custom_call.1} parent=1 // pred_fallthru
      _
    // Predicated region
    $region14: #{tpu_custom_call.1} parent=1 // pred_check
      _
    $region15: #{tpu_custom_call.1} parent=1 // pred_check_branch
      %37 = sbr.rel (0) target = $region17
    $region16: #{tpu_custom_call.1} parent=1 // pred_region
      %39 = dma.done [#allocation7], 16
    $region17: #{tpu_custom_call.1} parent=1 // pred_fallthru
      _
    %40 = sfence
    %v41 = vld [vmem:[#allocation4] sm:$0xff]
    %v42 = vld [vmem:[#allocation4 + $0x8] sm:$0xff]
    %45 = vst [vmem:[#allocation1] ss:$2 sm:$0xff] %v41
    %v46 = vld.sshfl [vmem:[#allocation1] sm:$0xff pattern:$0x75316420]
    %v47 = vld.sshfl [vmem:[#allocation1 + $0x8] sm:$0xff pattern:$0x75316420]
    %s48 = scalar_lea.vmem [#allocation1], 16
    %49 = vst [vmem:[%s48] ss:$2 sm:$0xff] %v42
    %v50 = vld.sshfl [vmem:[#allocation1 + $0x10] sm:$0xff pattern:$0x75316420]
    %v51 = vld.sshfl [vmem:[#allocation1 + $0x18] sm:$0xff pattern:$0x75316420]
    %vm56 = vcmask 1043456
    %v57 = vsel %vm56, %v46, 0.0
    %v58 = vrot.slane %v57, 4
    %v59 = vadd.f32 %v57, %v58
    %v60 = vrot.slane %v59, 2
    %v61 = vadd.f32 %v59, %v60
    %v62 = vrot.slane %v61, 1
    %v63 = vadd.f32 %v61, %v62
    %v64 = vsel %vm56, %v47, 0.0
    %v65 = vrot.slane %v64, 4
    %v66 = vadd.f32 %v64, %v65
    %v67 = vrot.slane %v66, 2
    %v68 = vadd.f32 %v66, %v67
    %v69 = vrot.slane %v68, 1
    %v70 = vadd.f32 %v68, %v69
    %v71 = vsel %vm56, %v50, 0.0
    %v72 = vrot.slane %v71, 4
    %v73 = vadd.f32 %v71, %v72
    %v74 = vrot.slane %v73, 2
    %v75 = vadd.f32 %v73, %v74
    %v76 = vrot.slane %v75, 1
    %v77 = vadd.f32 %v75, %v76
    %v78 = vsel %vm56, %v51, 0.0
    %v79 = vrot.slane %v78, 4
    %v80 = vadd.f32 %v78, %v79
    %v81 = vrot.slane %v80, 2
    %v82 = vadd.f32 %v80, %v81
    %v83 = vrot.slane %v82, 1
    %v84 = vadd.f32 %v82, %v83
    %85 = vst [vmem:[#allocation1] ss:$2 sm:$0xff] %v41
    %v86 = vld.sshfl [vmem:[#allocation1] sm:$0xff pattern:$0x75316420]
    %v87 = vld.sshfl [vmem:[#allocation1 + $0x8] sm:$0xff pattern:$0x75316420]
    %s88 = scalar_lea.vmem [#allocation1], 16
    %89 = vst [vmem:[%s88] ss:$2 sm:$0xff] %v42
    %v90 = vld.sshfl [vmem:[#allocation1 + $0x10] sm:$0xff pattern:$0x75316420]
    %v91 = vld.sshfl [vmem:[#allocation1 + $0x18] sm:$0xff pattern:$0x75316420]
    %v96 = vsel %vm56, %v86, -inf
    %v97 = vrot.slane %v96, 4
    %v98 = vmax.f32 %v96, %v97
    %v99 = vrot.slane %v98, 2
    %v100 = vmax.f32 %v98, %v99
    %v101 = vrot.slane %v100, 1
    %v102 = vmax.f32 %v100, %v101
    %v103 = vsel %vm56, %v87, -inf
    %v104 = vrot.slane %v103, 4
    %v105 = vmax.f32 %v103, %v104
    %v106 = vrot.slane %v105, 2
    %v107 = vmax.f32 %v105, %v106
    %v108 = vrot.slane %v107, 1
    %v109 = vmax.f32 %v107, %v108
    %v110 = vsel %vm56, %v90, -inf
    %v111 = vrot.slane %v110, 4
    %v112 = vmax.f32 %v110, %v111
    %v113 = vrot.slane %v112, 2
    %v114 = vmax.f32 %v112, %v113
    %v115 = vrot.slane %v114, 1
    %v116 = vmax.f32 %v114, %v115
    %v117 = vsel %vm56, %v91, -inf
    %v118 = vrot.slane %v117, 4
    %v119 = vmax.f32 %v117, %v118
    %v120 = vrot.slane %v119, 2
    %v121 = vmax.f32 %v119, %v120
    %v122 = vrot.slane %v121, 1
    %v123 = vmax.f32 %v121, %v122
    %v124 = vlaneseq
    %v125 = vand.u32 %v124, 127
    %v126 = vadd.s32 %v125, 128
    %vm127 = vcmp.lt.s32.totalorder %v125, 0
    %v128 = vsub.s32 0, %v125
    %v129 = vsel %vm127, %v128, %v125
    %v130 = vshrl.u32 %v129, 4
    %v131 = vand.u32 %v129, 15
    %v132 = vsub.s32 0, %v131
    %v133 = vsel %vm127, %v132, %v131
    %vm134 = vcmp.lt.s32.totalorder %v126, 0
    %v135 = vsub.s32 0, %v126
    %v136 = vsel %vm134, %v135, %v126
    %v137 = vshrl.u32 %v136, 4
    %v138 = vand.u32 %v136, 15
    %v139 = vsub.s32 0, %v138
    %v140 = vsel %vm134, %v139, %v138
    %vm141 = vcmp.ne.s32.totalorder %v133, 0
    %vm142 = vcmp.ne.s32.totalorder %v140, 0
    %vm143 = vcmp.lt.s32.totalorder %v133, 0
    %vm144 = vcmp.lt.s32.totalorder %v140, 0
    %vm145 = vmand %vm143, %vm141
    %vm146 = vmand %vm144, %vm142
    %v147 = vadd.s32 %v133, 16
    %v148 = vadd.s32 %v140, 16
    %v149 = vsel %vm145, %v147, %v133
    %v150 = vsel %vm146, %v148, %v140
    %vm155 = vcmask 1041409
    %v156 = vsel %vm155, %v77, %v63
    %v157 = vsel %vm155, %v84, %v70
    %158 = vrot.lane.b32.xlu0 %v156, 3
    %v159 = vpop.permute.xlu0 %158
    %160 = vrot.lane.b32.xlu0 %v157, 3
    %v161 = vpop.permute.xlu0 %160
    %vm162 = vcmask 23552
    %v163 = vsel %vm162, %v159, %v161
    %v166 = vsel %vm162, 0.0, %v159
    %v171 = vsel %vm155, %v116, %v102
    %v172 = vsel %vm155, %v123, %v109
    %173 = vrot.lane.b32.xlu0 %v171, 3
    %v174 = vpop.permute.xlu0 %173
    %175 = vrot.lane.b32.xlu0 %v172, 3
    %v176 = vpop.permute.xlu0 %175
    %v177 = vsel %vm162, %v174, %v176
    %v180 = vsel %vm162, 0.0, %v174
    %v181 = vadd.s32 %v149, 4294967293
    %v182 = vadd.s32 %v150, 4294967293
    %vm183 = vcmp.ge.s32.totalorder %v181, 0
    %vm184 = vcmp.ge.s32.totalorder %v182, 0
    %vm185 = vcmp.lt.s32.totalorder %v181, 16
    %vm186 = vcmp.lt.s32.totalorder %v182, 16
    %vm187 = vmand %vm183, %vm185
    %vm188 = vmand %vm184, %vm186
    %v189 = vsel %vm187, 1, 0
    %v190 = vsel %vm188, 1, 0
    %vm191 = vcmp.eq.s32.totalorder %v189, 1
    %vm192 = vcmp.eq.s32.totalorder %v190, 1
    %v193 = vsel %vm191, %v166, 0.0
    %v194 = vsel %vm192, %v163, 0.0
    %v195 = vsel %vm191, %v180, 0.0
    %v196 = vsel %vm192, %v177, 0.0
    %s197 = sld [smem:[#allocation8]]
    %v198 = vstv %s197
    %v199 = vmul.f32 %v198, %v193
    %v200 = vmul.f32 %v198, %v194
    %s201 = sld [smem:[#allocation8 + $0x31]]
    %v202 = vstv %s201
    %v203 = vmul.f32 %v202, %v195
    %v204 = vmul.f32 %v202, %v196
    %v205 = vadd.f32 %v199, %v203
    %v206 = vadd.f32 %v200, %v204
    %s207 = sld [smem:[#allocation8 + $0x7]]
    %v208 = vstv %s207
    %v209 = vmul.f32 %v208, %v193
    %v210 = vmul.f32 %v208, %v194
    %s211 = sld [smem:[#allocation8 + $0x38]]
    %v212 = vstv %s211
    %v213 = vmul.f32 %v212, %v195
    %v214 = vmul.f32 %v212, %v196
    %v215 = vadd.f32 %v209, %v213
    %v216 = vadd.f32 %v210, %v214
    %s217 = sld [smem:[#allocation8 + $0xe]]
    %v218 = vstv %s217
    %v219 = vmul.f32 %v218, %v193
    %v220 = vmul.f32 %v218, %v194
    %s221 = sld [smem:[#allocation8 + $0x3f]]
    %v222 = vstv %s221
    %v223 = vmul.f32 %v222, %v195
    %v224 = vmul.f32 %v222, %v196
    %v225 = vadd.f32 %v219, %v223
    %v226 = vadd.f32 %v220, %v224
    %s227 = sld [smem:[#allocation8 + $0x15]]
    %v228 = vstv %s227
    %v229 = vmul.f32 %v228, %v193
    %v230 = vmul.f32 %v228, %v194
    %s231 = sld [smem:[#allocation8 + $0x46]]
    %v232 = vstv %s231
    %v233 = vmul.f32 %v232, %v195
    %v234 = vmul.f32 %v232, %v196
    %v235 = vadd.f32 %v229, %v233
    %v236 = vadd.f32 %v230, %v234
    %s237 = sld [smem:[#allocation8 + $0x1c]]
    %v238 = vstv %s237
    %v239 = vmul.f32 %v238, %v193
    %v240 = vmul.f32 %v238, %v194
    %s241 = sld [smem:[#allocation8 + $0x4d]]
    %v242 = vstv %s241
    %v243 = vmul.f32 %v242, %v195
    %v244 = vmul.f32 %v242, %v196
    %v245 = vadd.f32 %v239, %v243
    %v246 = vadd.f32 %v240, %v244
    %s247 = sld [smem:[#allocation8 + $0x23]]
    %v248 = vstv %s247
    %v249 = vmul.f32 %v248, %v193
    %v250 = vmul.f32 %v248, %v194
    %s251 = sld [smem:[#allocation8 + $0x54]]
    %v252 = vstv %s251
    %v253 = vmul.f32 %v252, %v195
    %v254 = vmul.f32 %v252, %v196
    %v255 = vadd.f32 %v249, %v253
    %v256 = vadd.f32 %v250, %v254
    %s257 = sld [smem:[#allocation8 + $0x2a]]
    %v258 = vstv %s257
    %v259 = vmul.f32 %v258, %v193
    %v260 = vmul.f32 %v258, %v194
    %s261 = sld [smem:[#allocation8 + $0x5b]]
    %v262 = vstv %s261
    %v263 = vmul.f32 %v262, %v195
    %v264 = vmul.f32 %v262, %v196
    %v265 = vadd.f32 %v259, %v263
    %v266 = vadd.f32 %v260, %v264
    %267 = vrot.lane.b32.xlu0 %v156, 2
    %v268 = vpop.permute.xlu0 %267
    %269 = vrot.lane.b32.xlu0 %v157, 2
    %v270 = vpop.permute.xlu0 %269
    %vm271 = vcmask 15360
    %v272 = vsel %vm271, %v268, %v270
    %v275 = vsel %vm271, 0.0, %v268
    %276 = vrot.lane.b32.xlu0 %v171, 2
    %v277 = vpop.permute.xlu0 %276
    %278 = vrot.lane.b32.xlu0 %v172, 2
    %v279 = vpop.permute.xlu0 %278
    %v280 = vsel %vm271, %v277, %v279
    %v283 = vsel %vm271, 0.0, %v277
    %v284 = vadd.s32 %v149, 4294967294
    %v285 = vadd.s32 %v150, 4294967294
    %vm286 = vcmp.ge.s32.totalorder %v284, 0
    %vm287 = vcmp.ge.s32.totalorder %v285, 0
    %vm288 = vcmp.lt.s32.totalorder %v284, 16
    %vm289 = vcmp.lt.s32.totalorder %v285, 16
    %vm290 = vmand %vm286, %vm288
    %vm291 = vmand %vm287, %vm289
    %v292 = vsel %vm290, 1, 0
    %v293 = vsel %vm291, 1, 0
    %vm294 = vcmp.eq.s32.totalorder %v292, 1
    %vm295 = vcmp.eq.s32.totalorder %v293, 1
    %v296 = vsel %vm294, %v275, 0.0
    %v297 = vsel %vm295, %v272, 0.0
    %v298 = vsel %vm294, %v283, 0.0
    %v299 = vsel %vm295, %v280, 0.0
    %s300 = sld [smem:[#allocation8 + $0x1]]
    %v301 = vstv %s300
    %v302 = vmul.f32 %v301, %v296
    %v303 = vmul.f32 %v301, %v297
    %s304 = sld [smem:[#allocation8 + $0x32]]
    %v305 = vstv %s304
    %v306 = vmul.f32 %v305, %v298
    %v307 = vmul.f32 %v305, %v299
    %v308 = vadd.f32 %v302, %v306
    %v309 = vadd.f32 %v303, %v307
    %v310 = vadd.f32 %v205, %v308
    %v311 = vadd.f32 %v206, %v309
    %s312 = sld [smem:[#allocation8 + $0x8]]
    %v313 = vstv %s312
    %v314 = vmul.f32 %v313, %v296
    %v315 = vmul.f32 %v313, %v297
    %s316 = sld [smem:[#allocation8 + $0x39]]
    %v317 = vstv %s316
    %v318 = vmul.f32 %v317, %v298
    %v319 = vmul.f32 %v317, %v299
    %v320 = vadd.f32 %v314, %v318
    %v321 = vadd.f32 %v315, %v319
    %v322 = vadd.f32 %v215, %v320
    %v323 = vadd.f32 %v216, %v321
    %s324 = sld [smem:[#allocation8 + $0xf]]
    %v325 = vstv %s324
    %v326 = vmul.f32 %v325, %v296
    %v327 = vmul.f32 %v325, %v297
    %s328 = sld [smem:[#allocation8 + $0x40]]
    %v329 = vstv %s328
    %v330 = vmul.f32 %v329, %v298
    %v331 = vmul.f32 %v329, %v299
    %v332 = vadd.f32 %v326, %v330
    %v333 = vadd.f32 %v327, %v331
    %v334 = vadd.f32 %v225, %v332
    %v335 = vadd.f32 %v226, %v333
    %s336 = sld [smem:[#allocation8 + $0x16]]
    %v337 = vstv %s336
    %v338 = vmul.f32 %v337, %v296
    %v339 = vmul.f32 %v337, %v297
    %s340 = sld [smem:[#allocation8 + $0x47]]
    %v341 = vstv %s340
    %v342 = vmul.f32 %v341, %v298
    %v343 = vmul.f32 %v341, %v299
    %v344 = vadd.f32 %v338, %v342
    %v345 = vadd.f32 %v339, %v343
    %v346 = vadd.f32 %v235, %v344
    %v347 = vadd.f32 %v236, %v345
    %s348 = sld [smem:[#allocation8 + $0x1d]]
    %v349 = vstv %s348
    %v350 = vmul.f32 %v349, %v296
    %v351 = vmul.f32 %v349, %v297
    %s352 = sld [smem:[#allocation8 + $0x4e]]
    %v353 = vstv %s352
    %v354 = vmul.f32 %v353, %v298
    %v355 = vmul.f32 %v353, %v299
    %v356 = vadd.f32 %v350, %v354
    %v357 = vadd.f32 %v351, %v355
    %v358 = vadd.f32 %v245, %v356
    %v359 = vadd.f32 %v246, %v357
    %s360 = sld [smem:[#allocation8 + $0x24]]
    %v361 = vstv %s360
    %v362 = vmul.f32 %v361, %v296
    %v363 = vmul.f32 %v361, %v297
    %s364 = sld [smem:[#allocation8 + $0x55]]
    %v365 = vstv %s364
    %v366 = vmul.f32 %v365, %v298
    %v367 = vmul.f32 %v365, %v299
    %v368 = vadd.f32 %v362, %v366
    %v369 = vadd.f32 %v363, %v367
    %v370 = vadd.f32 %v255, %v368
    %v371 = vadd.f32 %v256, %v369
    %s372 = sld [smem:[#allocation8 + $0x2b]]
    %v373 = vstv %s372
    %v374 = vmul.f32 %v373, %v296
    %v375 = vmul.f32 %v373, %v297
    %s376 = sld [smem:[#allocation8 + $0x5c]]
    %v377 = vstv %s376
    %v378 = vmul.f32 %v377, %v298
    %v379 = vmul.f32 %v377, %v299
    %v380 = vadd.f32 %v374, %v378
    %v381 = vadd.f32 %v375, %v379
    %v382 = vadd.f32 %v265, %v380
    %v383 = vadd.f32 %v266, %v381
    %384 = vrot.lane.b32.xlu0 %v156, 1
    %v385 = vpop.permute.xlu0 %384
    %386 = vrot.lane.b32.xlu0 %v157, 1
    %v387 = vpop.permute.xlu0 %386
    %vm388 = vcmask 7168
    %v389 = vsel %vm388, %v385, %v387
    %v392 = vsel %vm388, 0.0, %v385
    %393 = vrot.lane.b32.xlu0 %v171, 1
    %v394 = vpop.permute.xlu0 %393
    %395 = vrot.lane.b32.xlu0 %v172, 1
    %v396 = vpop.permute.xlu0 %395
    %v397 = vsel %vm388, %v394, %v396
    %v400 = vsel %vm388, 0.0, %v394
    %v401 = vadd.s32 %v149, 4294967295
    %v402 = vadd.s32 %v150, 4294967295
    %vm403 = vcmp.ge.s32.totalorder %v401, 0
    %vm404 = vcmp.ge.s32.totalorder %v402, 0
    %vm405 = vcmp.lt.s32.totalorder %v401, 16
    %vm406 = vcmp.lt.s32.totalorder %v402, 16
    %vm407 = vmand %vm403, %vm405
    %vm408 = vmand %vm404, %vm406
    %v409 = vsel %vm407, 1, 0
    %v410 = vsel %vm408, 1, 0
    %vm411 = vcmp.eq.s32.totalorder %v409, 1
    %vm412 = vcmp.eq.s32.totalorder %v410, 1
    %v413 = vsel %vm411, %v392, 0.0
    %v414 = vsel %vm412, %v389, 0.0
    %v415 = vsel %vm411, %v400, 0.0
    %v416 = vsel %vm412, %v397, 0.0
    %s417 = sld [smem:[#allocation8 + $0x2]]
    %v418 = vstv %s417
    %v419 = vmul.f32 %v418, %v413
    %v420 = vmul.f32 %v418, %v414
    %s421 = sld [smem:[#allocation8 + $0x33]]
    %v422 = vstv %s421
    %v423 = vmul.f32 %v422, %v415
    %v424 = vmul.f32 %v422, %v416
    %v425 = vadd.f32 %v419, %v423
    %v426 = vadd.f32 %v420, %v424
    %v427 = vadd.f32 %v310, %v425
    %v428 = vadd.f32 %v311, %v426
    %s429 = sld [smem:[#allocation8 + $0x9]]
    %v430 = vstv %s429
    %v431 = vmul.f32 %v430, %v413
    %v432 = vmul.f32 %v430, %v414
    %s433 = sld [smem:[#allocation8 + $0x3a]]
    %v434 = vstv %s433
    %v435 = vmul.f32 %v434, %v415
    %v436 = vmul.f32 %v434, %v416
    %v437 = vadd.f32 %v431, %v435
    %v438 = vadd.f32 %v432, %v436
    %v439 = vadd.f32 %v322, %v437
    %v440 = vadd.f32 %v323, %v438
    %s441 = sld [smem:[#allocation8 + $0x10]]
    %v442 = vstv %s441
    %v443 = vmul.f32 %v442, %v413
    %v444 = vmul.f32 %v442, %v414
    %s445 = sld [smem:[#allocation8 + $0x41]]
    %v446 = vstv %s445
    %v447 = vmul.f32 %v446, %v415
    %v448 = vmul.f32 %v446, %v416
    %v449 = vadd.f32 %v443, %v447
    %v450 = vadd.f32 %v444, %v448
    %v451 = vadd.f32 %v334, %v449
    %v452 = vadd.f32 %v335, %v450
    %s453 = sld [smem:[#allocation8 + $0x17]]
    %v454 = vstv %s453
    %v455 = vmul.f32 %v454, %v413
    %v456 = vmul.f32 %v454, %v414
    %s457 = sld [smem:[#allocation8 + $0x48]]
    %v458 = vstv %s457
    %v459 = vmul.f32 %v458, %v415
    %v460 = vmul.f32 %v458, %v416
    %v461 = vadd.f32 %v455, %v459
    %v462 = vadd.f32 %v456, %v460
    %v463 = vadd.f32 %v346, %v461
    %v464 = vadd.f32 %v347, %v462
    %s465 = sld [smem:[#allocation8 + $0x1e]]
    %v466 = vstv %s465
    %v467 = vmul.f32 %v466, %v413
    %v468 = vmul.f32 %v466, %v414
    %s469 = sld [smem:[#allocation8 + $0x4f]]
    %v470 = vstv %s469
    %v471 = vmul.f32 %v470, %v415
    %v472 = vmul.f32 %v470, %v416
    %v473 = vadd.f32 %v467, %v471
    %v474 = vadd.f32 %v468, %v472
    %v475 = vadd.f32 %v358, %v473
    %v476 = vadd.f32 %v359, %v474
    %s477 = sld [smem:[#allocation8 + $0x25]]
    %v478 = vstv %s477
    %v479 = vmul.f32 %v478, %v413
    %v480 = vmul.f32 %v478, %v414
    %s481 = sld [smem:[#allocation8 + $0x56]]
    %v482 = vstv %s481
    %v483 = vmul.f32 %v482, %v415
    %v484 = vmul.f32 %v482, %v416
    %v485 = vadd.f32 %v479, %v483
    %v486 = vadd.f32 %v480, %v484
    %v487 = vadd.f32 %v370, %v485
    %v488 = vadd.f32 %v371, %v486
    %s489 = sld [smem:[#allocation8 + $0x2c]]
    %v490 = vstv %s489
    %v491 = vmul.f32 %v490, %v413
    %v492 = vmul.f32 %v490, %v414
    %s493 = sld [smem:[#allocation8 + $0x5d]]
    %v494 = vstv %s493
    %v495 = vmul.f32 %v494, %v415
    %v496 = vmul.f32 %v494, %v416
    %v497 = vadd.f32 %v491, %v495
    %v498 = vadd.f32 %v492, %v496
    %v499 = vadd.f32 %v382, %v497
    %v500 = vadd.f32 %v383, %v498
    %s501 = sld [smem:[#allocation8 + $0x3]]
    %v502 = vstv %s501
    %v503 = vmul.f32 %v502, %v63
    %v504 = vmul.f32 %v502, %v70
    %v505 = vmul.f32 %v502, %v77
    %v506 = vmul.f32 %v502, %v84
    %s507 = sld [smem:[#allocation8 + $0x34]]
    %v508 = vstv %s507
    %v509 = vmul.f32 %v508, %v102
    %v510 = vmul.f32 %v508, %v109
    %v511 = vmul.f32 %v508, %v116
    %v512 = vmul.f32 %v508, %v123
    %v513 = vadd.f32 %v503, %v509
    %v514 = vadd.f32 %v504, %v510
    %v515 = vadd.f32 %v505, %v511
    %v516 = vadd.f32 %v506, %v512
    %v521 = vsel %vm155, %v515, %v513
    %v522 = vsel %vm155, %v516, %v514
    %v525 = vadd.f32 %v427, %v521
    %v526 = vadd.f32 %v428, %v522
    %s527 = sld [smem:[#allocation8 + $0xa]]
    %v528 = vstv %s527
    %v529 = vmul.f32 %v528, %v63
    %v530 = vmul.f32 %v528, %v70
    %v531 = vmul.f32 %v528, %v77
    %v532 = vmul.f32 %v528, %v84
    %s533 = sld [smem:[#allocation8 + $0x3b]]
    %v534 = vstv %s533
    %v535 = vmul.f32 %v534, %v102
    %v536 = vmul.f32 %v534, %v109
    %v537 = vmul.f32 %v534, %v116
    %v538 = vmul.f32 %v534, %v123
    %v539 = vadd.f32 %v529, %v535
    %v540 = vadd.f32 %v530, %v536
    %v541 = vadd.f32 %v531, %v537
    %v542 = vadd.f32 %v532, %v538
    %v547 = vsel %vm155, %v541, %v539
    %v548 = vsel %vm155, %v542, %v540
    %v551 = vadd.f32 %v439, %v547
    %v552 = vadd.f32 %v440, %v548
    %s553 = sld [smem:[#allocation8 + $0x11]]
    %v554 = vstv %s553
    %v555 = vmul.f32 %v554, %v63
    %v556 = vmul.f32 %v554, %v70
    %v557 = vmul.f32 %v554, %v77
    %v558 = vmul.f32 %v554, %v84
    %s559 = sld [smem:[#allocation8 + $0x42]]
    %v560 = vstv %s559
    %v561 = vmul.f32 %v560, %v102
    %v562 = vmul.f32 %v560, %v109
    %v563 = vmul.f32 %v560, %v116
    %v564 = vmul.f32 %v560, %v123
    %v565 = vadd.f32 %v555, %v561
    %v566 = vadd.f32 %v556, %v562
    %v567 = vadd.f32 %v557, %v563
    %v568 = vadd.f32 %v558, %v564
    %v573 = vsel %vm155, %v567, %v565
    %v574 = vsel %vm155, %v568, %v566
    %v577 = vadd.f32 %v451, %v573
    %v578 = vadd.f32 %v452, %v574
    %s579 = sld [smem:[#allocation8 + $0x18]]
    %v580 = vstv %s579
    %v581 = vmul.f32 %v580, %v63
    %v582 = vmul.f32 %v580, %v70
    %v583 = vmul.f32 %v580, %v77
    %v584 = vmul.f32 %v580, %v84
    %s585 = sld [smem:[#allocation8 + $0x49]]
    %v586 = vstv %s585
    %v587 = vmul.f32 %v586, %v102
    %v588 = vmul.f32 %v586, %v109
    %v589 = vmul.f32 %v586, %v116
    %v590 = vmul.f32 %v586, %v123
    %v591 = vadd.f32 %v581, %v587
    %v592 = vadd.f32 %v582, %v588
    %v593 = vadd.f32 %v583, %v589
    %v594 = vadd.f32 %v584, %v590
    %v599 = vsel %vm155, %v593, %v591
    %v600 = vsel %vm155, %v594, %v592
    %v603 = vadd.f32 %v463, %v599
    %v604 = vadd.f32 %v464, %v600
    %s605 = sld [smem:[#allocation8 + $0x1f]]
    %v606 = vstv %s605
    %v607 = vmul.f32 %v606, %v63
    %v608 = vmul.f32 %v606, %v70
    %v609 = vmul.f32 %v606, %v77
    %v610 = vmul.f32 %v606, %v84
    %s611 = sld [smem:[#allocation8 + $0x50]]
    %v612 = vstv %s611
    %v613 = vmul.f32 %v612, %v102
    %v614 = vmul.f32 %v612, %v109
    %v615 = vmul.f32 %v612, %v116
    %v616 = vmul.f32 %v612, %v123
    %v617 = vadd.f32 %v607, %v613
    %v618 = vadd.f32 %v608, %v614
    %v619 = vadd.f32 %v609, %v615
    %v620 = vadd.f32 %v610, %v616
    %v625 = vsel %vm155, %v619, %v617
    %v626 = vsel %vm155, %v620, %v618
    %v629 = vadd.f32 %v475, %v625
    %v630 = vadd.f32 %v476, %v626
    %s631 = sld [smem:[#allocation8 + $0x26]]
    %v632 = vstv %s631
    %v633 = vmul.f32 %v632, %v63
    %v634 = vmul.f32 %v632, %v70
    %v635 = vmul.f32 %v632, %v77
    %v636 = vmul.f32 %v632, %v84
    %s637 = sld [smem:[#allocation8 + $0x57]]
    %v638 = vstv %s637
    %v639 = vmul.f32 %v638, %v102
    %v640 = vmul.f32 %v638, %v109
    %v641 = vmul.f32 %v638, %v116
    %v642 = vmul.f32 %v638, %v123
    %v643 = vadd.f32 %v633, %v639
    %v644 = vadd.f32 %v634, %v640
    %v645 = vadd.f32 %v635, %v641
    %v646 = vadd.f32 %v636, %v642
    %v651 = vsel %vm155, %v645, %v643
    %v652 = vsel %vm155, %v646, %v644
    %v655 = vadd.f32 %v487, %v651
    %v656 = vadd.f32 %v488, %v652
    %s657 = sld [smem:[#allocation8 + $0x2d]]
    %v658 = vstv %s657
    %v659 = vmul.f32 %v658, %v63
    %v660 = vmul.f32 %v658, %v70
    %v661 = vmul.f32 %v658, %v77
    %v662 = vmul.f32 %v658, %v84
    %s663 = sld [smem:[#allocation8 + $0x5e]]
    %v664 = vstv %s663
    %v665 = vmul.f32 %v664, %v102
    %v666 = vmul.f32 %v664, %v109
    %v667 = vmul.f32 %v664, %v116
    %v668 = vmul.f32 %v664, %v123
    %v669 = vadd.f32 %v659, %v665
    %v670 = vadd.f32 %v660, %v666
    %v671 = vadd.f32 %v661, %v667
    %v672 = vadd.f32 %v662, %v668
    %v677 = vsel %vm155, %v671, %v669
    %v678 = vsel %vm155, %v672, %v670
    %v681 = vadd.f32 %v499, %v677
    %v682 = vadd.f32 %v500, %v678
    %683 = vrot.lane.b32.xlu0 %v156, 127
    %v684 = vpop.permute.xlu0 %683
    %685 = vrot.lane.b32.xlu0 %v157, 127
    %v686 = vpop.permute.xlu0 %685
    %vm687 = vcmask 1039360
    %v688 = vsel %vm687, %v684, %v686
    %v691 = vsel %vm687, %v686, 0.0
    %692 = vrot.lane.b32.xlu0 %v171, 127
    %v693 = vpop.permute.xlu0 %692
    %694 = vrot.lane.b32.xlu0 %v172, 127
    %v695 = vpop.permute.xlu0 %694
    %v696 = vsel %vm687, %v693, %v695
    %v699 = vsel %vm687, %v695, 0.0
    %v700 = vadd.s32 %v149, 1
    %v701 = vadd.s32 %v150, 1
    %vm702 = vcmp.ge.s32.totalorder %v700, 0
    %vm703 = vcmp.ge.s32.totalorder %v701, 0
    %vm704 = vcmp.lt.s32.totalorder %v700, 16
    %vm705 = vcmp.lt.s32.totalorder %v701, 16
    %vm706 = vmand %vm702, %vm704
    %vm707 = vmand %vm703, %vm705
    %v708 = vsel %vm706, 1, 0
    %v709 = vsel %vm707, 1, 0
    %vm710 = vcmp.eq.s32.totalorder %v708, 1
    %vm711 = vcmp.eq.s32.totalorder %v709, 1
    %v712 = vsel %vm710, %v688, 0.0
    %v713 = vsel %vm711, %v691, 0.0
    %v714 = vsel %vm710, %v696, 0.0
    %v715 = vsel %vm711, %v699, 0.0
    %s716 = sld [smem:[#allocation8 + $0x4]]
    %v717 = vstv %s716
    %v718 = vmul.f32 %v717, %v712
    %v719 = vmul.f32 %v717, %v713
    %s720 = sld [smem:[#allocation8 + $0x35]]
    %v721 = vstv %s720
    %v722 = vmul.f32 %v721, %v714
    %v723 = vmul.f32 %v721, %v715
    %v724 = vadd.f32 %v718, %v722
    %v725 = vadd.f32 %v719, %v723
    %v726 = vadd.f32 %v525, %v724
    %v727 = vadd.f32 %v526, %v725
    %s728 = sld [smem:[#allocation8 + $0xb]]
    %v729 = vstv %s728
    %v730 = vmul.f32 %v729, %v712
    %v731 = vmul.f32 %v729, %v713
    %s732 = sld [smem:[#allocation8 + $0x3c]]
    %v733 = vstv %s732
    %v734 = vmul.f32 %v733, %v714
    %v735 = vmul.f32 %v733, %v715
    %v736 = vadd.f32 %v730, %v734
    %v737 = vadd.f32 %v731, %v735
    %v738 = vadd.f32 %v551, %v736
    %v739 = vadd.f32 %v552, %v737
    %s740 = sld [smem:[#allocation8 + $0x12]]
    %v741 = vstv %s740
    %v742 = vmul.f32 %v741, %v712
    %v743 = vmul.f32 %v741, %v713
    %s744 = sld [smem:[#allocation8 + $0x43]]
    %v745 = vstv %s744
    %v746 = vmul.f32 %v745, %v714
    %v747 = vmul.f32 %v745, %v715
    %v748 = vadd.f32 %v742, %v746
    %v749 = vadd.f32 %v743, %v747
    %v750 = vadd.f32 %v577, %v748
    %v751 = vadd.f32 %v578, %v749
    %s752 = sld [smem:[#allocation8 + $0x19]]
    %v753 = vstv %s752
    %v754 = vmul.f32 %v753, %v712
    %v755 = vmul.f32 %v753, %v713
    %s756 = sld [smem:[#allocation8 + $0x4a]]
    %v757 = vstv %s756
    %v758 = vmul.f32 %v757, %v714
    %v759 = vmul.f32 %v757, %v715
    %v760 = vadd.f32 %v754, %v758
    %v761 = vadd.f32 %v755, %v759
    %v762 = vadd.f32 %v603, %v760
    %v763 = vadd.f32 %v604, %v761
    %s764 = sld [smem:[#allocation8 + $0x20]]
    %v765 = vstv %s764
    %v766 = vmul.f32 %v765, %v712
    %v767 = vmul.f32 %v765, %v713
    %s768 = sld [smem:[#allocation8 + $0x51]]
    %v769 = vstv %s768
    %v770 = vmul.f32 %v769, %v714
    %v771 = vmul.f32 %v769, %v715
    %v772 = vadd.f32 %v766, %v770
    %v773 = vadd.f32 %v767, %v771
    %v774 = vadd.f32 %v629, %v772
    %v775 = vadd.f32 %v630, %v773
    %s776 = sld [smem:[#allocation8 + $0x27]]
    %v777 = vstv %s776
    %v778 = vmul.f32 %v777, %v712
    %v779 = vmul.f32 %v777, %v713
    %s780 = sld [smem:[#allocation8 + $0x58]]
    %v781 = vstv %s780
    %v782 = vmul.f32 %v781, %v714
    %v783 = vmul.f32 %v781, %v715
    %v784 = vadd.f32 %v778, %v782
    %v785 = vadd.f32 %v779, %v783
    %v786 = vadd.f32 %v655, %v784
    %v787 = vadd.f32 %v656, %v785
    %s788 = sld [smem:[#allocation8 + $0x2e]]
    %v789 = vstv %s788
    %v790 = vmul.f32 %v789, %v712
    %v791 = vmul.f32 %v789, %v713
    %s792 = sld [smem:[#allocation8 + $0x5f]]
    %v793 = vstv %s792
    %v794 = vmul.f32 %v793, %v714
    %v795 = vmul.f32 %v793, %v715
    %v796 = vadd.f32 %v790, %v794
    %v797 = vadd.f32 %v791, %v795
    %v798 = vadd.f32 %v681, %v796
    %v799 = vadd.f32 %v682, %v797
    %800 = vrot.lane.b32.xlu0 %v156, 126
    %v801 = vpop.permute.xlu0 %800
    %802 = vrot.lane.b32.xlu0 %v157, 126
    %v803 = vpop.permute.xlu0 %802
    %vm804 = vcmask 1031168
    %v805 = vsel %vm804, %v801, %v803
    %v808 = vsel %vm804, %v803, 0.0
    %809 = vrot.lane.b32.xlu0 %v171, 126
    %v810 = vpop.permute.xlu0 %809
    %811 = vrot.lane.b32.xlu0 %v172, 126
    %v812 = vpop.permute.xlu0 %811
    %v813 = vsel %vm804, %v810, %v812
    %v816 = vsel %vm804, %v812, 0.0
    %v817 = vadd.s32 %v149, 2
    %v818 = vadd.s32 %v150, 2
    %vm819 = vcmp.ge.s32.totalorder %v817, 0
    %vm820 = vcmp.ge.s32.totalorder %v818, 0
    %vm821 = vcmp.lt.s32.totalorder %v817, 16
    %vm822 = vcmp.lt.s32.totalorder %v818, 16
    %vm823 = vmand %vm819, %vm821
    %vm824 = vmand %vm820, %vm822
    %v825 = vsel %vm823, 1, 0
    %v826 = vsel %vm824, 1, 0
    %vm827 = vcmp.eq.s32.totalorder %v825, 1
    %vm828 = vcmp.eq.s32.totalorder %v826, 1
    %v829 = vsel %vm827, %v805, 0.0
    %v830 = vsel %vm828, %v808, 0.0
    %v831 = vsel %vm827, %v813, 0.0
    %v832 = vsel %vm828, %v816, 0.0
    %s833 = sld [smem:[#allocation8 + $0x5]]
    %v834 = vstv %s833
    %v835 = vmul.f32 %v834, %v829
    %v836 = vmul.f32 %v834, %v830
    %s837 = sld [smem:[#allocation8 + $0x36]]
    %v838 = vstv %s837
    %v839 = vmul.f32 %v838, %v831
    %v840 = vmul.f32 %v838, %v832
    %v841 = vadd.f32 %v835, %v839
    %v842 = vadd.f32 %v836, %v840
    %v843 = vadd.f32 %v726, %v841
    %v844 = vadd.f32 %v727, %v842
    %s845 = sld [smem:[#allocation8 + $0xc]]
    %v846 = vstv %s845
    %v847 = vmul.f32 %v846, %v829
    %v848 = vmul.f32 %v846, %v830
    %s849 = sld [smem:[#allocation8 + $0x3d]]
    %v850 = vstv %s849
    %v851 = vmul.f32 %v850, %v831
    %v852 = vmul.f32 %v850, %v832
    %v853 = vadd.f32 %v847, %v851
    %v854 = vadd.f32 %v848, %v852
    %v855 = vadd.f32 %v738, %v853
    %v856 = vadd.f32 %v739, %v854
    %s857 = sld [smem:[#allocation8 + $0x13]]
    %v858 = vstv %s857
    %v859 = vmul.f32 %v858, %v829
    %v860 = vmul.f32 %v858, %v830
    %s861 = sld [smem:[#allocation8 + $0x44]]
    %v862 = vstv %s861
    %v863 = vmul.f32 %v862, %v831
    %v864 = vmul.f32 %v862, %v832
    %v865 = vadd.f32 %v859, %v863
    %v866 = vadd.f32 %v860, %v864
    %v867 = vadd.f32 %v750, %v865
    %v868 = vadd.f32 %v751, %v866
    %s869 = sld [smem:[#allocation8 + $0x1a]]
    %v870 = vstv %s869
    %v871 = vmul.f32 %v870, %v829
    %v872 = vmul.f32 %v870, %v830
    %s873 = sld [smem:[#allocation8 + $0x4b]]
    %v874 = vstv %s873
    %v875 = vmul.f32 %v874, %v831
    %v876 = vmul.f32 %v874, %v832
    %v877 = vadd.f32 %v871, %v875
    %v878 = vadd.f32 %v872, %v876
    %v879 = vadd.f32 %v762, %v877
    %v880 = vadd.f32 %v763, %v878
    %s881 = sld [smem:[#allocation8 + $0x21]]
    %v882 = vstv %s881
    %v883 = vmul.f32 %v882, %v829
    %v884 = vmul.f32 %v882, %v830
    %s885 = sld [smem:[#allocation8 + $0x52]]
    %v886 = vstv %s885
    %v887 = vmul.f32 %v886, %v831
    %v888 = vmul.f32 %v886, %v832
    %v889 = vadd.f32 %v883, %v887
    %v890 = vadd.f32 %v884, %v888
    %v891 = vadd.f32 %v774, %v889
    %v892 = vadd.f32 %v775, %v890
    %s893 = sld [smem:[#allocation8 + $0x28]]
    %v894 = vstv %s893
    %v895 = vmul.f32 %v894, %v829
    %v896 = vmul.f32 %v894, %v830
    %s897 = sld [smem:[#allocation8 + $0x59]]
    %v898 = vstv %s897
    %v899 = vmul.f32 %v898, %v831
    %v900 = vmul.f32 %v898, %v832
    %v901 = vadd.f32 %v895, %v899
    %v902 = vadd.f32 %v896, %v900
    %v903 = vadd.f32 %v786, %v901
    %v904 = vadd.f32 %v787, %v902
    %s905 = sld [smem:[#allocation8 + $0x2f]]
    %v906 = vstv %s905
    %v907 = vmul.f32 %v906, %v829
    %v908 = vmul.f32 %v906, %v830
    %s909 = sld [smem:[#allocation8 + $0x60]]
    %v910 = vstv %s909
    %v911 = vmul.f32 %v910, %v831
    %v912 = vmul.f32 %v910, %v832
    %v913 = vadd.f32 %v907, %v911
    %v914 = vadd.f32 %v908, %v912
    %v915 = vadd.f32 %v798, %v913
    %v916 = vadd.f32 %v799, %v914
    %917 = vrot.lane.b32.xlu0 %v156, 125
    %v918 = vpop.permute.xlu0 %917
    %919 = vrot.lane.b32.xlu0 %v157, 125
    %v920 = vpop.permute.xlu0 %919
    %vm921 = vcmask 1022976
    %v922 = vsel %vm921, %v918, %v920
    %v925 = vsel %vm921, %v920, 0.0
    %926 = vrot.lane.b32.xlu0 %v171, 125
    %v927 = vpop.permute.xlu0 %926
    %928 = vrot.lane.b32.xlu0 %v172, 125
    %v929 = vpop.permute.xlu0 %928
    %v930 = vsel %vm921, %v927, %v929
    %v933 = vsel %vm921, %v929, 0.0
    %v934 = vadd.s32 %v149, 3
    %v935 = vadd.s32 %v150, 3
    %vm936 = vcmp.ge.s32.totalorder %v934, 0
    %vm937 = vcmp.ge.s32.totalorder %v935, 0
    %vm938 = vcmp.lt.s32.totalorder %v934, 16
    %vm939 = vcmp.lt.s32.totalorder %v935, 16
    %vm940 = vmand %vm936, %vm938
    %vm941 = vmand %vm937, %vm939
    %v942 = vsel %vm940, 1, 0
    %v943 = vsel %vm941, 1, 0
    %vm944 = vcmp.eq.s32.totalorder %v942, 1
    %vm945 = vcmp.eq.s32.totalorder %v943, 1
    %v946 = vsel %vm944, %v922, 0.0
    %v947 = vsel %vm945, %v925, 0.0
    %v948 = vsel %vm944, %v930, 0.0
    %v949 = vsel %vm945, %v933, 0.0
    %s950 = sld [smem:[#allocation8 + $0x6]]
    %v951 = vstv %s950
    %v952 = vmul.f32 %v951, %v946
    %v953 = vmul.f32 %v951, %v947
    %s954 = sld [smem:[#allocation8 + $0x37]]
    %v955 = vstv %s954
    %v956 = vmul.f32 %v955, %v948
    %v957 = vmul.f32 %v955, %v949
    %v958 = vadd.f32 %v952, %v956
    %v959 = vadd.f32 %v953, %v957
    %v960 = vadd.f32 %v843, %v958
    %v961 = vadd.f32 %v844, %v959
    %s962 = sld [smem:[#allocation8 + $0xd]]
    %v963 = vstv %s962
    %v964 = vmul.f32 %v963, %v946
    %v965 = vmul.f32 %v963, %v947
    %s966 = sld [smem:[#allocation8 + $0x3e]]
    %v967 = vstv %s966
    %v968 = vmul.f32 %v967, %v948
    %v969 = vmul.f32 %v967, %v949
    %v970 = vadd.f32 %v964, %v968
    %v971 = vadd.f32 %v965, %v969
    %v972 = vadd.f32 %v855, %v970
    %v973 = vadd.f32 %v856, %v971
    %s974 = sld [smem:[#allocation8 + $0x14]]
    %v975 = vstv %s974
    %v976 = vmul.f32 %v975, %v946
    %v977 = vmul.f32 %v975, %v947
    %s978 = sld [smem:[#allocation8 + $0x45]]
    %v979 = vstv %s978
    %v980 = vmul.f32 %v979, %v948
    %v981 = vmul.f32 %v979, %v949
    %v982 = vadd.f32 %v976, %v980
    %v983 = vadd.f32 %v977, %v981
    %v984 = vadd.f32 %v867, %v982
    %v985 = vadd.f32 %v868, %v983
    %s986 = sld [smem:[#allocation8 + $0x1b]]
    %v987 = vstv %s986
    %v988 = vmul.f32 %v987, %v946
    %v989 = vmul.f32 %v987, %v947
    %s990 = sld [smem:[#allocation8 + $0x4c]]
    %v991 = vstv %s990
    %v992 = vmul.f32 %v991, %v948
    %v993 = vmul.f32 %v991, %v949
    %v994 = vadd.f32 %v988, %v992
    %v995 = vadd.f32 %v989, %v993
    %v996 = vadd.f32 %v879, %v994
    %v997 = vadd.f32 %v880, %v995
    %s998 = sld [smem:[#allocation8 + $0x22]]
    %v999 = vstv %s998
    %v1000 = vmul.f32 %v999, %v946
    %v1001 = vmul.f32 %v999, %v947
    %s1002 = sld [smem:[#allocation8 + $0x53]]
    %v1003 = vstv %s1002
    %v1004 = vmul.f32 %v1003, %v948
    %v1005 = vmul.f32 %v1003, %v949
    %v1006 = vadd.f32 %v1000, %v1004
    %v1007 = vadd.f32 %v1001, %v1005
    %v1008 = vadd.f32 %v891, %v1006
    %v1009 = vadd.f32 %v892, %v1007
    %s1010 = sld [smem:[#allocation8 + $0x29]]
    %v1011 = vstv %s1010
    %v1012 = vmul.f32 %v1011, %v946
    %v1013 = vmul.f32 %v1011, %v947
    %s1014 = sld [smem:[#allocation8 + $0x5a]]
    %v1015 = vstv %s1014
    %v1016 = vmul.f32 %v1015, %v948
    %v1017 = vmul.f32 %v1015, %v949
    %v1018 = vadd.f32 %v1012, %v1016
    %v1019 = vadd.f32 %v1013, %v1017
    %v1020 = vadd.f32 %v903, %v1018
    %v1021 = vadd.f32 %v904, %v1019
    %s1022 = sld [smem:[#allocation8 + $0x30]]
    %v1023 = vstv %s1022
    %v1024 = vmul.f32 %v1023, %v946
    %v1025 = vmul.f32 %v1023, %v947
    %s1026 = sld [smem:[#allocation8 + $0x61]]
    %v1027 = vstv %s1026
    %v1028 = vmul.f32 %v1027, %v948
    %v1029 = vmul.f32 %v1027, %v949
    %v1030 = vadd.f32 %v1024, %v1028
    %v1031 = vadd.f32 %v1025, %v1029
    %v1032 = vadd.f32 %v915, %v1030
    %v1033 = vadd.f32 %v916, %v1031
    %1036 = vrot.lane.b32.xlu0 %v960, 48
    %v1037 = vpop.permute.xlu0 %1036
    %1038 = vrot.lane.b32.xlu0 %v961, 48
    %v1039 = vpop.permute.xlu0 %1038
    %vm1040 = vcmask 392192
    %v1041 = vsel %vm1040, %v1037, %v1039
    %v1044 = vsel %vm1040, 0.0, %v1037
    %1047 = vrot.lane.b32.xlu0 %v972, 32
    %v1048 = vpop.permute.xlu0 %1047
    %1049 = vrot.lane.b32.xlu0 %v973, 32
    %v1050 = vpop.permute.xlu0 %1049
    %vm1051 = vcmask 261120
    %v1052 = vsel %vm1051, %v1048, %v1050
    %v1055 = vsel %vm1051, 0.0, %v1048
    %v1056 = vadd.f32 %v1044, %v1055
    %v1057 = vadd.f32 %v1041, %v1052
    %1060 = vrot.lane.b32.xlu0 %v984, 16
    %v1061 = vpop.permute.xlu0 %1060
    %1062 = vrot.lane.b32.xlu0 %v985, 16
    %v1063 = vpop.permute.xlu0 %1062
    %vm1064 = vcmask 130048
    %v1065 = vsel %vm1064, %v1061, %v1063
    %v1068 = vsel %vm1064, 0.0, %v1061
    %v1069 = vadd.f32 %v1056, %v1068
    %v1070 = vadd.f32 %v1057, %v1065
    %v1071 = vadd.f32 %v1069, %v996
    %v1072 = vadd.f32 %v1070, %v997
    %1075 = vrot.lane.b32.xlu0 %v1008, 112
    %v1076 = vpop.permute.xlu0 %1075
    %1077 = vrot.lane.b32.xlu0 %v1009, 112
    %v1078 = vpop.permute.xlu0 %1077
    %vm1079 = vcmask 916480
    %v1080 = vsel %vm1079, %v1076, %v1078
    %v1083 = vsel %vm1079, %v1078, 0.0
    %v1084 = vadd.f32 %v1071, %v1080
    %v1085 = vadd.f32 %v1072, %v1083
    %1088 = vrot.lane.b32.xlu0 %v1020, 96
    %v1089 = vpop.permute.xlu0 %1088
    %1090 = vrot.lane.b32.xlu0 %v1021, 96
    %v1091 = vpop.permute.xlu0 %1090
    %vm1092 = vcmask 785408
    %v1093 = vsel %vm1092, %v1089, %v1091
    %v1096 = vsel %vm1092, %v1091, 0.0
    %v1097 = vadd.f32 %v1084, %v1093
    %v1098 = vadd.f32 %v1085, %v1096
    %1101 = vrot.lane.b32.xlu0 %v1032, 80
    %v1102 = vpop.permute.xlu0 %1101
    %1103 = vrot.lane.b32.xlu0 %v1033, 80
    %v1104 = vpop.permute.xlu0 %1103
    %vm1105 = vcmask 654336
    %v1106 = vsel %vm1105, %v1102, %v1104
    %v1109 = vsel %vm1105, %v1104, 0.0
    %v1110 = vadd.f32 %v1097, %v1106
    %v1111 = vadd.f32 %v1098, %v1109
    %v1112 = vxor.u32 %v1110, 2147483648
    %v1113 = vxor.u32 %v1111, 2147483648
    %v1114 = vmul.f32 %v1112, 1.442695
    %v1115 = vpow.pop %v1114
    %v1116 = vmul.f32 %v1113, 1.442695
    %v1117 = vpow.pop %v1116
    %v1118 = vadd.f32 %v1115, 1.0
    %v1119 = vadd.f32 %v1117, 1.0
    %v1120 = vrcp.pop %v1118
    %v1121 = vmul.f32 %v1118, %v1120
    %v1122 = vsub.f32 1.0, %v1121
    %v1123 = vmul.f32 %v1120, %v1122
    %v1124 = vadd.f32 %v1120, %v1123
    %vm1125 = vweird.f32 %v1118
    %vm1126 = vweird.f32 %v1120
    %vm1127 = vmor %vm1125, %vm1126
    %v1128 = vsel %vm1127, %v1120, %v1124
    %v1129 = vand.u32 2147483647, %v1118
    %vm1130 = vcmp.eq.f32.partialorder %v1129, 8.507059e+37
    %v1131 = vand.u32 %v1118, 2147483648
    %v1132 = vor.u32 1.1754944e-38, %v1131
    %v1133 = vsel %vm1130, %v1132, %v1128
    %v1134 = vmul.f32 1.0, %v1133
    %v1135 = vrcp.pop %v1119
    %v1136 = vmul.f32 %v1119, %v1135
    %v1137 = vsub.f32 1.0, %v1136
    %v1138 = vmul.f32 %v1135, %v1137
    %v1139 = vadd.f32 %v1135, %v1138
    %vm1140 = vweird.f32 %v1119
    %vm1141 = vweird.f32 %v1135
    %vm1142 = vmor %vm1140, %vm1141
    %v1143 = vsel %vm1142, %v1135, %v1139
    %v1144 = vand.u32 2147483647, %v1119
    %vm1145 = vcmp.eq.f32.partialorder %v1144, 8.507059e+37
    %v1146 = vand.u32 %v1119, 2147483648
    %v1147 = vor.u32 1.1754944e-38, %v1146
    %v1148 = vsel %vm1145, %v1147, %v1143
    %v1149 = vmul.f32 1.0, %v1148
    %v1152 = vrot.slane %v1149, 7
    %vm1153 = vcmask 1040384
    %v1154 = vsel %vm1153, %v1134, %v1152
    %v1155 = vsel %vm155, %v1134, %v1152
    %v1156 = vrot.slane %v1155, 1
    %v1159 = vlaneseq
    %vm1160 = vcmp.ge.s32.totalorder %v1159, 0
    %vm1161 = vcmp.lt.s32.totalorder %v1159, 256
    %vm1162 = vmand %vm1160, %vm1161
    %1163 = vst.msk [vmem:[#allocation9] sm:$0x3] %vm1162, %v1154
    %1164 = vst.msk [vmem:[#allocation9 + $0x2] sm:$0x3] %vm1162, %v1156
    // Predicated region
    $region18: #{tpu_custom_call.1} parent=1 // pred_check
      _
    $region19: #{tpu_custom_call.1} parent=1 // pred_check_branch
      %1166 = sbr.rel (0) target = $region21
    $region20: #{tpu_custom_call.1} parent=1 // pred_region
      %1168 = vsyncadd [#allocation6], 0
      %s1169 = sshll.u32 [#allocation9], 4
      %s1170 = int_to_ptr.vmem [resolvable:$true] %s1169
      %s1171 = sshll.u32 %s2, 4
      %s1172 = int_to_ptr.hbm [resolvable:$true] %s1171
      %1177 = dma.vmem_to_hbm [thread:$0]  %s1170, 64, %s1172, [#allocation6], 32, 32, 2
    $region21: #{tpu_custom_call.1} parent=1 // pred_fallthru
      _
    // Predicated region
    $region22: #{tpu_custom_call.1} parent=1 // pred_check
      _
    $region23: #{tpu_custom_call.1} parent=1 // pred_check_branch
      %1179 = sbr.rel (0) target = $region25
    $region24: #{tpu_custom_call.1} parent=1 // pred_region
      %1181 = dma.done [#allocation6], 64
    $region25: #{tpu_custom_call.1} parent=1 // pred_fallthru
      _
    %1182 = vsyncpa [#allocation5], 1
    %1183 = vsyncpa [#allocation6], 1
    %1184 = vsyncpa [#allocation7], 1

</llo_original>
